<compile_context>
chip_gen: v5e
topology: v5e:2x2
jax: 0.10.0
libtpu: 0.0.40
codegen_flags: <defaults>
</compile_context>

<pallas_src>
import jax
import jax.numpy as jnp
from jax.experimental import pallas as pl
from jax.experimental.pallas import tpu as pltpu


def _pick_batch_block(n, per_image_bytes, budget_bytes=4 * 1024 * 1024):
    """Largest batch block B such that B divides N, B is N or a multiple of 8
    (legal (8,128) tiling for the (B, H*W) minor dims) and the per-block VMEM
    footprint stays under budget; >=2 grid steps preferred so the 'parallel'
    batch axis can shard across TensorCores."""
    cap = max(1, budget_bytes // max(per_image_bytes, 1))
    mult8 = [b for b in range(8, n + 1, 8) if n % b == 0]
    good = [b for b in mult8 if b <= cap and n // b >= 2]
    if good:
        return max(good)
    if n <= cap:
        return n
    inside = [b for b in mult8 if b <= cap]
    if inside:
        return max(inside)
    return min(mult8) if mult8 else n


def separable_conv2d(x, w_dw, b_dw, w_pw, b_pw):
    """x: (N, Cin, H, W); w_dw: (Cout, 1, kH, kW); b_dw: (Cout,);
    w_pw: (Cout, Cout, 1, 1); b_pw: (Cout,).  Returns (N, Cout, Ho, Wo),
    matching nn.Conv2d(groups=in_ch) followed by a 1x1 Conv2d (stride=1, pad=0)."""
    n, cin, h, w = x.shape
    cout, _, kh, kw = w_dw.shape
    if cout % cin != 0:
        raise ValueError("depthwise conv with groups=in_ch needs out_ch % in_ch == 0")
    mult = cout // cin
    ho, wo = h - kh + 1, w - kw + 1
    hw = h * w
    kk = kh * kw
    pad = (kh - 1) * w + (kw - 1)          # largest flat tap offset
    hwp = hw + pad

    # ---- wrapper-side layout plumbing (XLA) ----
    # (N, Cin, H, W) -> (Cin, N, H*W + pad): channels lead, flat spatial on lanes.
    x_r = jnp.transpose(x, (1, 0, 2, 3)).reshape(cin, n, hw)
    x_r = jnp.pad(x_r, ((0, 0), (0, 0), (0, pad)))
    wdw_r = w_dw.reshape(cout, kk).astype(jnp.float32)       # scalar taps (SMEM)
    wpw_r = w_pw.reshape(cout, cout).astype(jnp.float32)     # 1x1 mix (SMEM)
    # Fold the depthwise bias through the (linear) pointwise conv.
    bias = wpw_r @ b_dw.astype(jnp.float32) + b_pw.astype(jnp.float32)   # (Cout,)

    # VMEM-driven batch-block size (double-buffered in/out + live temporaries).
    per_image = 4 * (2 * (cin * hwp + cout * hw) + (kk + cout + 2) * hw)
    b_blk = _pick_batch_block(n, per_image)
    grid = (n // b_blk,)

    def kernel(x_ref, wdw_ref, wpw_ref, bias_ref, o_ref):
        # x_ref   : (Cin, B, H*W + pad)  VMEM
        # wdw_ref : (Cout, kH*kW)        SMEM scalar depthwise taps
        # wpw_ref : (Cout, Cout)         SMEM pointwise weights
        # bias_ref: (Cout,)              SMEM combined bias (Wpw @ b_dw + b_pw)
        # o_ref   : (Cout, B, H*W)       VMEM full-width output (halo dropped outside)
        dw = [None] * cout
        for ci in range(cin):
            xc = x_ref[ci].astype(jnp.float32)                # (B, H*W + pad)
            # One shifted full-width window per tap, shared by the `mult`
            # output channels that read this input channel (groups=Cin).
            shifted = []
            for ih in range(kh):
                for iw in range(kw):
                    s = ih * w + iw
                    shifted.append(xc[:, s:s + hw])            # (B, H*W)
            for m in range(mult):
                co = ci * mult + m
                acc = wdw_ref[co, 0] * shifted[0]              # init with first tap
                for t in range(1, kk):
                    acc = acc + wdw_ref[co, t] * shifted[t]
                dw[co] = acc                                   # (B, H*W) f32

        # Pointwise 1x1 channel mix on the VPU (Cout is tiny; the MXU would idle).
        for o in range(cout):
            acc = wpw_ref[o, 0] * dw[0]
            for c in range(1, cout):
                acc = acc + wpw_ref[o, c] * dw[c]
            o_ref[o] = (acc + bias_ref[o]).astype(o_ref.dtype)

    out_flat = pl.pallas_call(
        kernel,
        out_shape=jax.ShapeDtypeStruct((cout, n, hw), x.dtype),
        grid_spec=pltpu.PrefetchScalarGridSpec(
            num_scalar_prefetch=0,
            grid=grid,
            in_specs=[
                pl.BlockSpec((cin, b_blk, hwp), lambda i: (0, i, 0)),
                pl.BlockSpec(memory_space=pltpu.MemorySpace.SMEM),
                pl.BlockSpec(memory_space=pltpu.MemorySpace.SMEM),
                pl.BlockSpec(memory_space=pltpu.MemorySpace.SMEM),
            ],
            out_specs=pl.BlockSpec((cout, b_blk, hw), lambda i: (0, i, 0)),
        ),
        compiler_params=pltpu.CompilerParams(
            dimension_semantics=("parallel",),
            vmem_limit_bytes=32 * 1024 * 1024,
        ),
    )(x_r, wdw_r, wpw_r, bias)

    # Un-flatten, drop the (kH-1, kW-1) pad/wrap halo, back to NCHW.
    out = out_flat.reshape(cout, n, h, w)[:, :, :ho, :wo]
    return jnp.transpose(out, (1, 0, 2, 3))


def _reference(x, w_dw, b_dw, w_pw, b_pw):
    """Pure-JAX reference matching PyTorch Conv2d semantics (NCHW, OIHW)."""
    cin = x.shape[1]
    dw = jax.lax.conv_general_dilated(
        x, w_dw, window_strides=(1, 1), padding="VALID",
        dimension_numbers=("NCHW", "OIHW", "NCHW"),
        feature_group_count=cin)
    dw = dw + b_dw.reshape(1, -1, 1, 1)
    pw = jax.lax.conv_general_dilated(
        dw, w_pw, window_strides=(1, 1), padding="VALID",
        dimension_numbers=("NCHW", "OIHW", "NCHW"))
    return pw + b_pw.reshape(1, -1, 1, 1)


if __name__ == "__main__":
    # Small shapes consistent with SeparableConv2D(in_ch=4, out_ch=8, kernel_size=3).
    N, Cin, H, W = 2, 4, 16, 16
    Cout, K = 8, 3               # out_ch must be a multiple of in_ch (groups=in_ch)

    key = jax.random.PRNGKey(0)
    kx, k1, k2, k3, k4 = jax.random.split(key, 5)

    x = jax.random.normal(kx, (N, Cin, H, W), dtype=jnp.float32)
    w_dw = 0.1 * jax.random.normal(k1, (Cout, 1, K, K), dtype=jnp.float32)
    b_dw = 0.1 * jax.random.normal(k2, (Cout,), dtype=jnp.float32)
    w_pw = 0.1 * jax.random.normal(k3, (Cout, Cout, 1, 1), dtype=jnp.float32)
    b_pw = 0.1 * jax.random.normal(k4, (Cout,), dtype=jnp.float32)

    out = jax.block_until_ready(separable_conv2d(x, w_dw, b_dw, w_pw, b_pw))
    ref = jax.block_until_ready(_reference(x, w_dw, b_dw, w_pw, b_pw))

    assert out.shape == (N, Cout, H - K + 1, W - K + 1)
    assert jnp.allclose(out, ref, atol=1e-4, rtol=1e-4), float(jnp.max(jnp.abs(out - ref)))
    print("KERNEL_OK")
</pallas_src>

<mosaic_0001>
module attributes {stable_mosaic.version = 11 : i64} {
  func.func @kernel(%arg0: i32, %arg1: memref<4x2x290xf32, #tpu.memory_space<vmem>>, %arg2: memref<8x9xf32, #tpu.memory_space<smem>>, %arg3: memref<8x8xf32, #tpu.memory_space<smem>>, %arg4: memref<8xf32, #tpu.memory_space<smem>>, %arg5: memref<8x2x256xf32, #tpu.memory_space<vmem>>) attributes {dimension_semantics = [#tpu.dimension_semantics<parallel>], iteration_bounds = array<i64: 1>, scalar_prefetch = 0 : i64, scratch_operands = 0 : i64, tpu.core_type = #tpu.core_type<tc>, window_params = [{transform_indices = @transform_0, window_bounds = array<i64: 4, 2, 290>}, {transform_indices = @transform_1, window_bounds = array<i64: 8, 9>}, {transform_indices = @transform_2, window_bounds = array<i64: 8, 8>}, {transform_indices = @transform_3, window_bounds = array<i64: 8>}, {transform_indices = @transform_4, window_bounds = array<i64: 8, 2, 256>}]} {
    %c0 = arith.constant 0 : index
    %c0_0 = arith.constant 0 : index
    %c0_1 = arith.constant 0 : index
    %0 = vector.load %arg1[%c0, %c0_0, %c0_1] : memref<4x2x290xf32, #tpu.memory_space<vmem>>, vector<1x2x290xf32>
    %1 = vector.shape_cast %0 : vector<1x2x290xf32> to vector<2x290xf32>
    %2 = vector.extract_strided_slice %1 {offsets = [0, 0], sizes = [2, 256], strides = [1, 1]} : vector<2x290xf32> to vector<2x256xf32>
    %3 = vector.extract_strided_slice %1 {offsets = [0, 1], sizes = [2, 256], strides = [1, 1]} : vector<2x290xf32> to vector<2x256xf32>
    %4 = vector.extract_strided_slice %1 {offsets = [0, 2], sizes = [2, 256], strides = [1, 1]} : vector<2x290xf32> to vector<2x256xf32>
    %5 = vector.extract_strided_slice %1 {offsets = [0, 16], sizes = [2, 256], strides = [1, 1]} : vector<2x290xf32> to vector<2x256xf32>
    %6 = vector.extract_strided_slice %1 {offsets = [0, 17], sizes = [2, 256], strides = [1, 1]} : vector<2x290xf32> to vector<2x256xf32>
    %7 = vector.extract_strided_slice %1 {offsets = [0, 18], sizes = [2, 256], strides = [1, 1]} : vector<2x290xf32> to vector<2x256xf32>
    %8 = vector.extract_strided_slice %1 {offsets = [0, 32], sizes = [2, 256], strides = [1, 1]} : vector<2x290xf32> to vector<2x256xf32>
    %9 = vector.extract_strided_slice %1 {offsets = [0, 33], sizes = [2, 256], strides = [1, 1]} : vector<2x290xf32> to vector<2x256xf32>
    %10 = vector.extract_strided_slice %1 {offsets = [0, 34], sizes = [2, 256], strides = [1, 1]} : vector<2x290xf32> to vector<2x256xf32>
    %c0_2 = arith.constant 0 : index
    %c0_3 = arith.constant 0 : index
    %11 = memref.load %arg2[%c0_2, %c0_3] : memref<8x9xf32, #tpu.memory_space<smem>>
    %12 = vector.broadcast %11 : f32 to vector<2x256xf32>
    %13 = arith.mulf %12, %2 : vector<2x256xf32>
    %c0_4 = arith.constant 0 : index
    %c1 = arith.constant 1 : index
    %14 = memref.load %arg2[%c0_4, %c1] : memref<8x9xf32, #tpu.memory_space<smem>>
    %15 = vector.broadcast %14 : f32 to vector<2x256xf32>
    %16 = arith.mulf %15, %3 : vector<2x256xf32>
    %17 = arith.addf %13, %16 : vector<2x256xf32>
    %c0_5 = arith.constant 0 : index
    %c2 = arith.constant 2 : index
    %18 = memref.load %arg2[%c0_5, %c2] : memref<8x9xf32, #tpu.memory_space<smem>>
    %19 = vector.broadcast %18 : f32 to vector<2x256xf32>
    %20 = arith.mulf %19, %4 : vector<2x256xf32>
    %21 = arith.addf %17, %20 : vector<2x256xf32>
    %c0_6 = arith.constant 0 : index
    %c3 = arith.constant 3 : index
    %22 = memref.load %arg2[%c0_6, %c3] : memref<8x9xf32, #tpu.memory_space<smem>>
    %23 = vector.broadcast %22 : f32 to vector<2x256xf32>
    %24 = arith.mulf %23, %5 : vector<2x256xf32>
    %25 = arith.addf %21, %24 : vector<2x256xf32>
    %c0_7 = arith.constant 0 : index
    %c4 = arith.constant 4 : index
    %26 = memref.load %arg2[%c0_7, %c4] : memref<8x9xf32, #tpu.memory_space<smem>>
    %27 = vector.broadcast %26 : f32 to vector<2x256xf32>
    %28 = arith.mulf %27, %6 : vector<2x256xf32>
    %29 = arith.addf %25, %28 : vector<2x256xf32>
    %c0_8 = arith.constant 0 : index
    %c5 = arith.constant 5 : index
    %30 = memref.load %arg2[%c0_8, %c5] : memref<8x9xf32, #tpu.memory_space<smem>>
    %31 = vector.broadcast %30 : f32 to vector<2x256xf32>
    %32 = arith.mulf %31, %7 : vector<2x256xf32>
    %33 = arith.addf %29, %32 : vector<2x256xf32>
    %c0_9 = arith.constant 0 : index
    %c6 = arith.constant 6 : index
    %34 = memref.load %arg2[%c0_9, %c6] : memref<8x9xf32, #tpu.memory_space<smem>>
    %35 = vector.broadcast %34 : f32 to vector<2x256xf32>
    %36 = arith.mulf %35, %8 : vector<2x256xf32>
    %37 = arith.addf %33, %36 : vector<2x256xf32>
    %c0_10 = arith.constant 0 : index
    %c7 = arith.constant 7 : index
    %38 = memref.load %arg2[%c0_10, %c7] : memref<8x9xf32, #tpu.memory_space<smem>>
    %39 = vector.broadcast %38 : f32 to vector<2x256xf32>
    %40 = arith.mulf %39, %9 : vector<2x256xf32>
    %41 = arith.addf %37, %40 : vector<2x256xf32>
    %c0_11 = arith.constant 0 : index
    %c8 = arith.constant 8 : index
    %42 = memref.load %arg2[%c0_11, %c8] : memref<8x9xf32, #tpu.memory_space<smem>>
    %43 = vector.broadcast %42 : f32 to vector<2x256xf32>
    %44 = arith.mulf %43, %10 : vector<2x256xf32>
    %45 = arith.addf %41, %44 : vector<2x256xf32>
    %c1_12 = arith.constant 1 : index
    %c0_13 = arith.constant 0 : index
    %46 = memref.load %arg2[%c1_12, %c0_13] : memref<8x9xf32, #tpu.memory_space<smem>>
    %47 = vector.broadcast %46 : f32 to vector<2x256xf32>
    %48 = arith.mulf %47, %2 : vector<2x256xf32>
    %c1_14 = arith.constant 1 : index
    %c1_15 = arith.constant 1 : index
    %49 = memref.load %arg2[%c1_14, %c1_15] : memref<8x9xf32, #tpu.memory_space<smem>>
    %50 = vector.broadcast %49 : f32 to vector<2x256xf32>
    %51 = arith.mulf %50, %3 : vector<2x256xf32>
    %52 = arith.addf %48, %51 : vector<2x256xf32>
    %c1_16 = arith.constant 1 : index
    %c2_17 = arith.constant 2 : index
    %53 = memref.load %arg2[%c1_16, %c2_17] : memref<8x9xf32, #tpu.memory_space<smem>>
    %54 = vector.broadcast %53 : f32 to vector<2x256xf32>
    %55 = arith.mulf %54, %4 : vector<2x256xf32>
    %56 = arith.addf %52, %55 : vector<2x256xf32>
    %c1_18 = arith.constant 1 : index
    %c3_19 = arith.constant 3 : index
    %57 = memref.load %arg2[%c1_18, %c3_19] : memref<8x9xf32, #tpu.memory_space<smem>>
    %58 = vector.broadcast %57 : f32 to vector<2x256xf32>
    %59 = arith.mulf %58, %5 : vector<2x256xf32>
    %60 = arith.addf %56, %59 : vector<2x256xf32>
    %c1_20 = arith.constant 1 : index
    %c4_21 = arith.constant 4 : index
    %61 = memref.load %arg2[%c1_20, %c4_21] : memref<8x9xf32, #tpu.memory_space<smem>>
    %62 = vector.broadcast %61 : f32 to vector<2x256xf32>
    %63 = arith.mulf %62, %6 : vector<2x256xf32>
    %64 = arith.addf %60, %63 : vector<2x256xf32>
    %c1_22 = arith.constant 1 : index
    %c5_23 = arith.constant 5 : index
    %65 = memref.load %arg2[%c1_22, %c5_23] : memref<8x9xf32, #tpu.memory_space<smem>>
    %66 = vector.broadcast %65 : f32 to vector<2x256xf32>
    %67 = arith.mulf %66, %7 : vector<2x256xf32>
    %68 = arith.addf %64, %67 : vector<2x256xf32>
    %c1_24 = arith.constant 1 : index
    %c6_25 = arith.constant 6 : index
    %69 = memref.load %arg2[%c1_24, %c6_25] : memref<8x9xf32, #tpu.memory_space<smem>>
    %70 = vector.broadcast %69 : f32 to vector<2x256xf32>
    %71 = arith.mulf %70, %8 : vector<2x256xf32>
    %72 = arith.addf %68, %71 : vector<2x256xf32>
    %c1_26 = arith.constant 1 : index
    %c7_27 = arith.constant 7 : index
    %73 = memref.load %arg2[%c1_26, %c7_27] : memref<8x9xf32, #tpu.memory_space<smem>>
    %74 = vector.broadcast %73 : f32 to vector<2x256xf32>
    %75 = arith.mulf %74, %9 : vector<2x256xf32>
    %76 = arith.addf %72, %75 : vector<2x256xf32>
    %c1_28 = arith.constant 1 : index
    %c8_29 = arith.constant 8 : index
    %77 = memref.load %arg2[%c1_28, %c8_29] : memref<8x9xf32, #tpu.memory_space<smem>>
    %78 = vector.broadcast %77 : f32 to vector<2x256xf32>
    %79 = arith.mulf %78, %10 : vector<2x256xf32>
    %80 = arith.addf %76, %79 : vector<2x256xf32>
    %c1_30 = arith.constant 1 : index
    %c0_31 = arith.constant 0 : index
    %c0_32 = arith.constant 0 : index
    %81 = vector.load %arg1[%c1_30, %c0_31, %c0_32] : memref<4x2x290xf32, #tpu.memory_space<vmem>>, vector<1x2x290xf32>
    %82 = vector.shape_cast %81 : vector<1x2x290xf32> to vector<2x290xf32>
    %83 = vector.extract_strided_slice %82 {offsets = [0, 0], sizes = [2, 256], strides = [1, 1]} : vector<2x290xf32> to vector<2x256xf32>
    %84 = vector.extract_strided_slice %82 {offsets = [0, 1], sizes = [2, 256], strides = [1, 1]} : vector<2x290xf32> to vector<2x256xf32>
    %85 = vector.extract_strided_slice %82 {offsets = [0, 2], sizes = [2, 256], strides = [1, 1]} : vector<2x290xf32> to vector<2x256xf32>
    %86 = vector.extract_strided_slice %82 {offsets = [0, 16], sizes = [2, 256], strides = [1, 1]} : vector<2x290xf32> to vector<2x256xf32>
    %87 = vector.extract_strided_slice %82 {offsets = [0, 17], sizes = [2, 256], strides = [1, 1]} : vector<2x290xf32> to vector<2x256xf32>
    %88 = vector.extract_strided_slice %82 {offsets = [0, 18], sizes = [2, 256], strides = [1, 1]} : vector<2x290xf32> to vector<2x256xf32>
    %89 = vector.extract_strided_slice %82 {offsets = [0, 32], sizes = [2, 256], strides = [1, 1]} : vector<2x290xf32> to vector<2x256xf32>
    %90 = vector.extract_strided_slice %82 {offsets = [0, 33], sizes = [2, 256], strides = [1, 1]} : vector<2x290xf32> to vector<2x256xf32>
    %91 = vector.extract_strided_slice %82 {offsets = [0, 34], sizes = [2, 256], strides = [1, 1]} : vector<2x290xf32> to vector<2x256xf32>
    %c2_33 = arith.constant 2 : index
    %c0_34 = arith.constant 0 : index
    %92 = memref.load %arg2[%c2_33, %c0_34] : memref<8x9xf32, #tpu.memory_space<smem>>
    %93 = vector.broadcast %92 : f32 to vector<2x256xf32>
    %94 = arith.mulf %93, %83 : vector<2x256xf32>
    %c2_35 = arith.constant 2 : index
    %c1_36 = arith.constant 1 : index
    %95 = memref.load %arg2[%c2_35, %c1_36] : memref<8x9xf32, #tpu.memory_space<smem>>
    %96 = vector.broadcast %95 : f32 to vector<2x256xf32>
    %97 = arith.mulf %96, %84 : vector<2x256xf32>
    %98 = arith.addf %94, %97 : vector<2x256xf32>
    %c2_37 = arith.constant 2 : index
    %c2_38 = arith.constant 2 : index
    %99 = memref.load %arg2[%c2_37, %c2_38] : memref<8x9xf32, #tpu.memory_space<smem>>
    %100 = vector.broadcast %99 : f32 to vector<2x256xf32>
    %101 = arith.mulf %100, %85 : vector<2x256xf32>
    %102 = arith.addf %98, %101 : vector<2x256xf32>
    %c2_39 = arith.constant 2 : index
    %c3_40 = arith.constant 3 : index
    %103 = memref.load %arg2[%c2_39, %c3_40] : memref<8x9xf32, #tpu.memory_space<smem>>
    %104 = vector.broadcast %103 : f32 to vector<2x256xf32>
    %105 = arith.mulf %104, %86 : vector<2x256xf32>
    %106 = arith.addf %102, %105 : vector<2x256xf32>
    %c2_41 = arith.constant 2 : index
    %c4_42 = arith.constant 4 : index
    %107 = memref.load %arg2[%c2_41, %c4_42] : memref<8x9xf32, #tpu.memory_space<smem>>
    %108 = vector.broadcast %107 : f32 to vector<2x256xf32>
    %109 = arith.mulf %108, %87 : vector<2x256xf32>
    %110 = arith.addf %106, %109 : vector<2x256xf32>
    %c2_43 = arith.constant 2 : index
    %c5_44 = arith.constant 5 : index
    %111 = memref.load %arg2[%c2_43, %c5_44] : memref<8x9xf32, #tpu.memory_space<smem>>
    %112 = vector.broadcast %111 : f32 to vector<2x256xf32>
    %113 = arith.mulf %112, %88 : vector<2x256xf32>
    %114 = arith.addf %110, %113 : vector<2x256xf32>
    %c2_45 = arith.constant 2 : index
    %c6_46 = arith.constant 6 : index
    %115 = memref.load %arg2[%c2_45, %c6_46] : memref<8x9xf32, #tpu.memory_space<smem>>
    %116 = vector.broadcast %115 : f32 to vector<2x256xf32>
    %117 = arith.mulf %116, %89 : vector<2x256xf32>
    %118 = arith.addf %114, %117 : vector<2x256xf32>
    %c2_47 = arith.constant 2 : index
    %c7_48 = arith.constant 7 : index
    %119 = memref.load %arg2[%c2_47, %c7_48] : memref<8x9xf32, #tpu.memory_space<smem>>
    %120 = vector.broadcast %119 : f32 to vector<2x256xf32>
    %121 = arith.mulf %120, %90 : vector<2x256xf32>
    %122 = arith.addf %118, %121 : vector<2x256xf32>
    %c2_49 = arith.constant 2 : index
    %c8_50 = arith.constant 8 : index
    %123 = memref.load %arg2[%c2_49, %c8_50] : memref<8x9xf32, #tpu.memory_space<smem>>
    %124 = vector.broadcast %123 : f32 to vector<2x256xf32>
    %125 = arith.mulf %124, %91 : vector<2x256xf32>
    %126 = arith.addf %122, %125 : vector<2x256xf32>
    %c3_51 = arith.constant 3 : index
    %c0_52 = arith.constant 0 : index
    %127 = memref.load %arg2[%c3_51, %c0_52] : memref<8x9xf32, #tpu.memory_space<smem>>
    %128 = vector.broadcast %127 : f32 to vector<2x256xf32>
    %129 = arith.mulf %128, %83 : vector<2x256xf32>
    %c3_53 = arith.constant 3 : index
    %c1_54 = arith.constant 1 : index
    %130 = memref.load %arg2[%c3_53, %c1_54] : memref<8x9xf32, #tpu.memory_space<smem>>
    %131 = vector.broadcast %130 : f32 to vector<2x256xf32>
    %132 = arith.mulf %131, %84 : vector<2x256xf32>
    %133 = arith.addf %129, %132 : vector<2x256xf32>
    %c3_55 = arith.constant 3 : index
    %c2_56 = arith.constant 2 : index
    %134 = memref.load %arg2[%c3_55, %c2_56] : memref<8x9xf32, #tpu.memory_space<smem>>
    %135 = vector.broadcast %134 : f32 to vector<2x256xf32>
    %136 = arith.mulf %135, %85 : vector<2x256xf32>
    %137 = arith.addf %133, %136 : vector<2x256xf32>
    %c3_57 = arith.constant 3 : index
    %c3_58 = arith.constant 3 : index
    %138 = memref.load %arg2[%c3_57, %c3_58] : memref<8x9xf32, #tpu.memory_space<smem>>
    %139 = vector.broadcast %138 : f32 to vector<2x256xf32>
    %140 = arith.mulf %139, %86 : vector<2x256xf32>
    %141 = arith.addf %137, %140 : vector<2x256xf32>
    %c3_59 = arith.constant 3 : index
    %c4_60 = arith.constant 4 : index
    %142 = memref.load %arg2[%c3_59, %c4_60] : memref<8x9xf32, #tpu.memory_space<smem>>
    %143 = vector.broadcast %142 : f32 to vector<2x256xf32>
    %144 = arith.mulf %143, %87 : vector<2x256xf32>
    %145 = arith.addf %141, %144 : vector<2x256xf32>
    %c3_61 = arith.constant 3 : index
    %c5_62 = arith.constant 5 : index
    %146 = memref.load %arg2[%c3_61, %c5_62] : memref<8x9xf32, #tpu.memory_space<smem>>
    %147 = vector.broadcast %146 : f32 to vector<2x256xf32>
    %148 = arith.mulf %147, %88 : vector<2x256xf32>
    %149 = arith.addf %145, %148 : vector<2x256xf32>
    %c3_63 = arith.constant 3 : index
    %c6_64 = arith.constant 6 : index
    %150 = memref.load %arg2[%c3_63, %c6_64] : memref<8x9xf32, #tpu.memory_space<smem>>
    %151 = vector.broadcast %150 : f32 to vector<2x256xf32>
    %152 = arith.mulf %151, %89 : vector<2x256xf32>
    %153 = arith.addf %149, %152 : vector<2x256xf32>
    %c3_65 = arith.constant 3 : index
    %c7_66 = arith.constant 7 : index
    %154 = memref.load %arg2[%c3_65, %c7_66] : memref<8x9xf32, #tpu.memory_space<smem>>
    %155 = vector.broadcast %154 : f32 to vector<2x256xf32>
    %156 = arith.mulf %155, %90 : vector<2x256xf32>
    %157 = arith.addf %153, %156 : vector<2x256xf32>
    %c3_67 = arith.constant 3 : index
    %c8_68 = arith.constant 8 : index
    %158 = memref.load %arg2[%c3_67, %c8_68] : memref<8x9xf32, #tpu.memory_space<smem>>
    %159 = vector.broadcast %158 : f32 to vector<2x256xf32>
    %160 = arith.mulf %159, %91 : vector<2x256xf32>
    %161 = arith.addf %157, %160 : vector<2x256xf32>
    %c2_69 = arith.constant 2 : index
    %c0_70 = arith.constant 0 : index
    %c0_71 = arith.constant 0 : index
    %162 = vector.load %arg1[%c2_69, %c0_70, %c0_71] : memref<4x2x290xf32, #tpu.memory_space<vmem>>, vector<1x2x290xf32>
    %163 = vector.shape_cast %162 : vector<1x2x290xf32> to vector<2x290xf32>
    %164 = vector.extract_strided_slice %163 {offsets = [0, 0], sizes = [2, 256], strides = [1, 1]} : vector<2x290xf32> to vector<2x256xf32>
    %165 = vector.extract_strided_slice %163 {offsets = [0, 1], sizes = [2, 256], strides = [1, 1]} : vector<2x290xf32> to vector<2x256xf32>
    %166 = vector.extract_strided_slice %163 {offsets = [0, 2], sizes = [2, 256], strides = [1, 1]} : vector<2x290xf32> to vector<2x256xf32>
    %167 = vector.extract_strided_slice %163 {offsets = [0, 16], sizes = [2, 256], strides = [1, 1]} : vector<2x290xf32> to vector<2x256xf32>
    %168 = vector.extract_strided_slice %163 {offsets = [0, 17], sizes = [2, 256], strides = [1, 1]} : vector<2x290xf32> to vector<2x256xf32>
    %169 = vector.extract_strided_slice %163 {offsets = [0, 18], sizes = [2, 256], strides = [1, 1]} : vector<2x290xf32> to vector<2x256xf32>
    %170 = vector.extract_strided_slice %163 {offsets = [0, 32], sizes = [2, 256], strides = [1, 1]} : vector<2x290xf32> to vector<2x256xf32>
    %171 = vector.extract_strided_slice %163 {offsets = [0, 33], sizes = [2, 256], strides = [1, 1]} : vector<2x290xf32> to vector<2x256xf32>
    %172 = vector.extract_strided_slice %163 {offsets = [0, 34], sizes = [2, 256], strides = [1, 1]} : vector<2x290xf32> to vector<2x256xf32>
    %c4_72 = arith.constant 4 : index
    %c0_73 = arith.constant 0 : index
    %173 = memref.load %arg2[%c4_72, %c0_73] : memref<8x9xf32, #tpu.memory_space<smem>>
    %174 = vector.broadcast %173 : f32 to vector<2x256xf32>
    %175 = arith.mulf %174, %164 : vector<2x256xf32>
    %c4_74 = arith.constant 4 : index
    %c1_75 = arith.constant 1 : index
    %176 = memref.load %arg2[%c4_74, %c1_75] : memref<8x9xf32, #tpu.memory_space<smem>>
    %177 = vector.broadcast %176 : f32 to vector<2x256xf32>
    %178 = arith.mulf %177, %165 : vector<2x256xf32>
    %179 = arith.addf %175, %178 : vector<2x256xf32>
    %c4_76 = arith.constant 4 : index
    %c2_77 = arith.constant 2 : index
    %180 = memref.load %arg2[%c4_76, %c2_77] : memref<8x9xf32, #tpu.memory_space<smem>>
    %181 = vector.broadcast %180 : f32 to vector<2x256xf32>
    %182 = arith.mulf %181, %166 : vector<2x256xf32>
    %183 = arith.addf %179, %182 : vector<2x256xf32>
    %c4_78 = arith.constant 4 : index
    %c3_79 = arith.constant 3 : index
    %184 = memref.load %arg2[%c4_78, %c3_79] : memref<8x9xf32, #tpu.memory_space<smem>>
    %185 = vector.broadcast %184 : f32 to vector<2x256xf32>
    %186 = arith.mulf %185, %167 : vector<2x256xf32>
    %187 = arith.addf %183, %186 : vector<2x256xf32>
    %c4_80 = arith.constant 4 : index
    %c4_81 = arith.constant 4 : index
    %188 = memref.load %arg2[%c4_80, %c4_81] : memref<8x9xf32, #tpu.memory_space<smem>>
    %189 = vector.broadcast %188 : f32 to vector<2x256xf32>
    %190 = arith.mulf %189, %168 : vector<2x256xf32>
    %191 = arith.addf %187, %190 : vector<2x256xf32>
    %c4_82 = arith.constant 4 : index
    %c5_83 = arith.constant 5 : index
    %192 = memref.load %arg2[%c4_82, %c5_83] : memref<8x9xf32, #tpu.memory_space<smem>>
    %193 = vector.broadcast %192 : f32 to vector<2x256xf32>
    %194 = arith.mulf %193, %169 : vector<2x256xf32>
    %195 = arith.addf %191, %194 : vector<2x256xf32>
    %c4_84 = arith.constant 4 : index
    %c6_85 = arith.constant 6 : index
    %196 = memref.load %arg2[%c4_84, %c6_85] : memref<8x9xf32, #tpu.memory_space<smem>>
    %197 = vector.broadcast %196 : f32 to vector<2x256xf32>
    %198 = arith.mulf %197, %170 : vector<2x256xf32>
    %199 = arith.addf %195, %198 : vector<2x256xf32>
    %c4_86 = arith.constant 4 : index
    %c7_87 = arith.constant 7 : index
    %200 = memref.load %arg2[%c4_86, %c7_87] : memref<8x9xf32, #tpu.memory_space<smem>>
    %201 = vector.broadcast %200 : f32 to vector<2x256xf32>
    %202 = arith.mulf %201, %171 : vector<2x256xf32>
    %203 = arith.addf %199, %202 : vector<2x256xf32>
    %c4_88 = arith.constant 4 : index
    %c8_89 = arith.constant 8 : index
    %204 = memref.load %arg2[%c4_88, %c8_89] : memref<8x9xf32, #tpu.memory_space<smem>>
    %205 = vector.broadcast %204 : f32 to vector<2x256xf32>
    %206 = arith.mulf %205, %172 : vector<2x256xf32>
    %207 = arith.addf %203, %206 : vector<2x256xf32>
    %c5_90 = arith.constant 5 : index
    %c0_91 = arith.constant 0 : index
    %208 = memref.load %arg2[%c5_90, %c0_91] : memref<8x9xf32, #tpu.memory_space<smem>>
    %209 = vector.broadcast %208 : f32 to vector<2x256xf32>
    %210 = arith.mulf %209, %164 : vector<2x256xf32>
    %c5_92 = arith.constant 5 : index
    %c1_93 = arith.constant 1 : index
    %211 = memref.load %arg2[%c5_92, %c1_93] : memref<8x9xf32, #tpu.memory_space<smem>>
    %212 = vector.broadcast %211 : f32 to vector<2x256xf32>
    %213 = arith.mulf %212, %165 : vector<2x256xf32>
    %214 = arith.addf %210, %213 : vector<2x256xf32>
    %c5_94 = arith.constant 5 : index
    %c2_95 = arith.constant 2 : index
    %215 = memref.load %arg2[%c5_94, %c2_95] : memref<8x9xf32, #tpu.memory_space<smem>>
    %216 = vector.broadcast %215 : f32 to vector<2x256xf32>
    %217 = arith.mulf %216, %166 : vector<2x256xf32>
    %218 = arith.addf %214, %217 : vector<2x256xf32>
    %c5_96 = arith.constant 5 : index
    %c3_97 = arith.constant 3 : index
    %219 = memref.load %arg2[%c5_96, %c3_97] : memref<8x9xf32, #tpu.memory_space<smem>>
    %220 = vector.broadcast %219 : f32 to vector<2x256xf32>
    %221 = arith.mulf %220, %167 : vector<2x256xf32>
    %222 = arith.addf %218, %221 : vector<2x256xf32>
    %c5_98 = arith.constant 5 : index
    %c4_99 = arith.constant 4 : index
    %223 = memref.load %arg2[%c5_98, %c4_99] : memref<8x9xf32, #tpu.memory_space<smem>>
    %224 = vector.broadcast %223 : f32 to vector<2x256xf32>
    %225 = arith.mulf %224, %168 : vector<2x256xf32>
    %226 = arith.addf %222, %225 : vector<2x256xf32>
    %c5_100 = arith.constant 5 : index
    %c5_101 = arith.constant 5 : index
    %227 = memref.load %arg2[%c5_100, %c5_101] : memref<8x9xf32, #tpu.memory_space<smem>>
    %228 = vector.broadcast %227 : f32 to vector<2x256xf32>
    %229 = arith.mulf %228, %169 : vector<2x256xf32>
    %230 = arith.addf %226, %229 : vector<2x256xf32>
    %c5_102 = arith.constant 5 : index
    %c6_103 = arith.constant 6 : index
    %231 = memref.load %arg2[%c5_102, %c6_103] : memref<8x9xf32, #tpu.memory_space<smem>>
    %232 = vector.broadcast %231 : f32 to vector<2x256xf32>
    %233 = arith.mulf %232, %170 : vector<2x256xf32>
    %234 = arith.addf %230, %233 : vector<2x256xf32>
    %c5_104 = arith.constant 5 : index
    %c7_105 = arith.constant 7 : index
    %235 = memref.load %arg2[%c5_104, %c7_105] : memref<8x9xf32, #tpu.memory_space<smem>>
    %236 = vector.broadcast %235 : f32 to vector<2x256xf32>
    %237 = arith.mulf %236, %171 : vector<2x256xf32>
    %238 = arith.addf %234, %237 : vector<2x256xf32>
    %c5_106 = arith.constant 5 : index
    %c8_107 = arith.constant 8 : index
    %239 = memref.load %arg2[%c5_106, %c8_107] : memref<8x9xf32, #tpu.memory_space<smem>>
    %240 = vector.broadcast %239 : f32 to vector<2x256xf32>
    %241 = arith.mulf %240, %172 : vector<2x256xf32>
    %242 = arith.addf %238, %241 : vector<2x256xf32>
    %c3_108 = arith.constant 3 : index
    %c0_109 = arith.constant 0 : index
    %c0_110 = arith.constant 0 : index
    %243 = vector.load %arg1[%c3_108, %c0_109, %c0_110] : memref<4x2x290xf32, #tpu.memory_space<vmem>>, vector<1x2x290xf32>
    %244 = vector.shape_cast %243 : vector<1x2x290xf32> to vector<2x290xf32>
    %245 = vector.extract_strided_slice %244 {offsets = [0, 0], sizes = [2, 256], strides = [1, 1]} : vector<2x290xf32> to vector<2x256xf32>
    %246 = vector.extract_strided_slice %244 {offsets = [0, 1], sizes = [2, 256], strides = [1, 1]} : vector<2x290xf32> to vector<2x256xf32>
    %247 = vector.extract_strided_slice %244 {offsets = [0, 2], sizes = [2, 256], strides = [1, 1]} : vector<2x290xf32> to vector<2x256xf32>
    %248 = vector.extract_strided_slice %244 {offsets = [0, 16], sizes = [2, 256], strides = [1, 1]} : vector<2x290xf32> to vector<2x256xf32>
    %249 = vector.extract_strided_slice %244 {offsets = [0, 17], sizes = [2, 256], strides = [1, 1]} : vector<2x290xf32> to vector<2x256xf32>
    %250 = vector.extract_strided_slice %244 {offsets = [0, 18], sizes = [2, 256], strides = [1, 1]} : vector<2x290xf32> to vector<2x256xf32>
    %251 = vector.extract_strided_slice %244 {offsets = [0, 32], sizes = [2, 256], strides = [1, 1]} : vector<2x290xf32> to vector<2x256xf32>
    %252 = vector.extract_strided_slice %244 {offsets = [0, 33], sizes = [2, 256], strides = [1, 1]} : vector<2x290xf32> to vector<2x256xf32>
    %253 = vector.extract_strided_slice %244 {offsets = [0, 34], sizes = [2, 256], strides = [1, 1]} : vector<2x290xf32> to vector<2x256xf32>
    %c6_111 = arith.constant 6 : index
    %c0_112 = arith.constant 0 : index
    %254 = memref.load %arg2[%c6_111, %c0_112] : memref<8x9xf32, #tpu.memory_space<smem>>
    %255 = vector.broadcast %254 : f32 to vector<2x256xf32>
    %256 = arith.mulf %255, %245 : vector<2x256xf32>
    %c6_113 = arith.constant 6 : index
    %c1_114 = arith.constant 1 : index
    %257 = memref.load %arg2[%c6_113, %c1_114] : memref<8x9xf32, #tpu.memory_space<smem>>
    %258 = vector.broadcast %257 : f32 to vector<2x256xf32>
    %259 = arith.mulf %258, %246 : vector<2x256xf32>
    %260 = arith.addf %256, %259 : vector<2x256xf32>
    %c6_115 = arith.constant 6 : index
    %c2_116 = arith.constant 2 : index
    %261 = memref.load %arg2[%c6_115, %c2_116] : memref<8x9xf32, #tpu.memory_space<smem>>
    %262 = vector.broadcast %261 : f32 to vector<2x256xf32>
    %263 = arith.mulf %262, %247 : vector<2x256xf32>
    %264 = arith.addf %260, %263 : vector<2x256xf32>
    %c6_117 = arith.constant 6 : index
    %c3_118 = arith.constant 3 : index
    %265 = memref.load %arg2[%c6_117, %c3_118] : memref<8x9xf32, #tpu.memory_space<smem>>
    %266 = vector.broadcast %265 : f32 to vector<2x256xf32>
    %267 = arith.mulf %266, %248 : vector<2x256xf32>
    %268 = arith.addf %264, %267 : vector<2x256xf32>
    %c6_119 = arith.constant 6 : index
    %c4_120 = arith.constant 4 : index
    %269 = memref.load %arg2[%c6_119, %c4_120] : memref<8x9xf32, #tpu.memory_space<smem>>
    %270 = vector.broadcast %269 : f32 to vector<2x256xf32>
    %271 = arith.mulf %270, %249 : vector<2x256xf32>
    %272 = arith.addf %268, %271 : vector<2x256xf32>
    %c6_121 = arith.constant 6 : index
    %c5_122 = arith.constant 5 : index
    %273 = memref.load %arg2[%c6_121, %c5_122] : memref<8x9xf32, #tpu.memory_space<smem>>
    %274 = vector.broadcast %273 : f32 to vector<2x256xf32>
    %275 = arith.mulf %274, %250 : vector<2x256xf32>
    %276 = arith.addf %272, %275 : vector<2x256xf32>
    %c6_123 = arith.constant 6 : index
    %c6_124 = arith.constant 6 : index
    %277 = memref.load %arg2[%c6_123, %c6_124] : memref<8x9xf32, #tpu.memory_space<smem>>
    %278 = vector.broadcast %277 : f32 to vector<2x256xf32>
    %279 = arith.mulf %278, %251 : vector<2x256xf32>
    %280 = arith.addf %276, %279 : vector<2x256xf32>
    %c6_125 = arith.constant 6 : index
    %c7_126 = arith.constant 7 : index
    %281 = memref.load %arg2[%c6_125, %c7_126] : memref<8x9xf32, #tpu.memory_space<smem>>
    %282 = vector.broadcast %281 : f32 to vector<2x256xf32>
    %283 = arith.mulf %282, %252 : vector<2x256xf32>
    %284 = arith.addf %280, %283 : vector<2x256xf32>
    %c6_127 = arith.constant 6 : index
    %c8_128 = arith.constant 8 : index
    %285 = memref.load %arg2[%c6_127, %c8_128] : memref<8x9xf32, #tpu.memory_space<smem>>
    %286 = vector.broadcast %285 : f32 to vector<2x256xf32>
    %287 = arith.mulf %286, %253 : vector<2x256xf32>
    %288 = arith.addf %284, %287 : vector<2x256xf32>
    %c7_129 = arith.constant 7 : index
    %c0_130 = arith.constant 0 : index
    %289 = memref.load %arg2[%c7_129, %c0_130] : memref<8x9xf32, #tpu.memory_space<smem>>
    %290 = vector.broadcast %289 : f32 to vector<2x256xf32>
    %291 = arith.mulf %290, %245 : vector<2x256xf32>
    %c7_131 = arith.constant 7 : index
    %c1_132 = arith.constant 1 : index
    %292 = memref.load %arg2[%c7_131, %c1_132] : memref<8x9xf32, #tpu.memory_space<smem>>
    %293 = vector.broadcast %292 : f32 to vector<2x256xf32>
    %294 = arith.mulf %293, %246 : vector<2x256xf32>
    %295 = arith.addf %291, %294 : vector<2x256xf32>
    %c7_133 = arith.constant 7 : index
    %c2_134 = arith.constant 2 : index
    %296 = memref.load %arg2[%c7_133, %c2_134] : memref<8x9xf32, #tpu.memory_space<smem>>
    %297 = vector.broadcast %296 : f32 to vector<2x256xf32>
    %298 = arith.mulf %297, %247 : vector<2x256xf32>
    %299 = arith.addf %295, %298 : vector<2x256xf32>
    %c7_135 = arith.constant 7 : index
    %c3_136 = arith.constant 3 : index
    %300 = memref.load %arg2[%c7_135, %c3_136] : memref<8x9xf32, #tpu.memory_space<smem>>
    %301 = vector.broadcast %300 : f32 to vector<2x256xf32>
    %302 = arith.mulf %301, %248 : vector<2x256xf32>
    %303 = arith.addf %299, %302 : vector<2x256xf32>
    %c7_137 = arith.constant 7 : index
    %c4_138 = arith.constant 4 : index
    %304 = memref.load %arg2[%c7_137, %c4_138] : memref<8x9xf32, #tpu.memory_space<smem>>
    %305 = vector.broadcast %304 : f32 to vector<2x256xf32>
    %306 = arith.mulf %305, %249 : vector<2x256xf32>
    %307 = arith.addf %303, %306 : vector<2x256xf32>
    %c7_139 = arith.constant 7 : index
    %c5_140 = arith.constant 5 : index
    %308 = memref.load %arg2[%c7_139, %c5_140] : memref<8x9xf32, #tpu.memory_space<smem>>
    %309 = vector.broadcast %308 : f32 to vector<2x256xf32>
    %310 = arith.mulf %309, %250 : vector<2x256xf32>
    %311 = arith.addf %307, %310 : vector<2x256xf32>
    %c7_141 = arith.constant 7 : index
    %c6_142 = arith.constant 6 : index
    %312 = memref.load %arg2[%c7_141, %c6_142] : memref<8x9xf32, #tpu.memory_space<smem>>
    %313 = vector.broadcast %312 : f32 to vector<2x256xf32>
    %314 = arith.mulf %313, %251 : vector<2x256xf32>
    %315 = arith.addf %311, %314 : vector<2x256xf32>
    %c7_143 = arith.constant 7 : index
    %c7_144 = arith.constant 7 : index
    %316 = memref.load %arg2[%c7_143, %c7_144] : memref<8x9xf32, #tpu.memory_space<smem>>
    %317 = vector.broadcast %316 : f32 to vector<2x256xf32>
    %318 = arith.mulf %317, %252 : vector<2x256xf32>
    %319 = arith.addf %315, %318 : vector<2x256xf32>
    %c7_145 = arith.constant 7 : index
    %c8_146 = arith.constant 8 : index
    %320 = memref.load %arg2[%c7_145, %c8_146] : memref<8x9xf32, #tpu.memory_space<smem>>
    %321 = vector.broadcast %320 : f32 to vector<2x256xf32>
    %322 = arith.mulf %321, %253 : vector<2x256xf32>
    %323 = arith.addf %319, %322 : vector<2x256xf32>
    %c0_147 = arith.constant 0 : index
    %c0_148 = arith.constant 0 : index
    %324 = memref.load %arg3[%c0_147, %c0_148] : memref<8x8xf32, #tpu.memory_space<smem>>
    %325 = vector.broadcast %324 : f32 to vector<2x256xf32>
    %326 = arith.mulf %325, %45 : vector<2x256xf32>
    %c0_149 = arith.constant 0 : index
    %c1_150 = arith.constant 1 : index
    %327 = memref.load %arg3[%c0_149, %c1_150] : memref<8x8xf32, #tpu.memory_space<smem>>
    %328 = vector.broadcast %327 : f32 to vector<2x256xf32>
    %329 = arith.mulf %328, %80 : vector<2x256xf32>
    %330 = arith.addf %326, %329 : vector<2x256xf32>
    %c0_151 = arith.constant 0 : index
    %c2_152 = arith.constant 2 : index
    %331 = memref.load %arg3[%c0_151, %c2_152] : memref<8x8xf32, #tpu.memory_space<smem>>
    %332 = vector.broadcast %331 : f32 to vector<2x256xf32>
    %333 = arith.mulf %332, %126 : vector<2x256xf32>
    %334 = arith.addf %330, %333 : vector<2x256xf32>
    %c0_153 = arith.constant 0 : index
    %c3_154 = arith.constant 3 : index
    %335 = memref.load %arg3[%c0_153, %c3_154] : memref<8x8xf32, #tpu.memory_space<smem>>
    %336 = vector.broadcast %335 : f32 to vector<2x256xf32>
    %337 = arith.mulf %336, %161 : vector<2x256xf32>
    %338 = arith.addf %334, %337 : vector<2x256xf32>
    %c0_155 = arith.constant 0 : index
    %c4_156 = arith.constant 4 : index
    %339 = memref.load %arg3[%c0_155, %c4_156] : memref<8x8xf32, #tpu.memory_space<smem>>
    %340 = vector.broadcast %339 : f32 to vector<2x256xf32>
    %341 = arith.mulf %340, %207 : vector<2x256xf32>
    %342 = arith.addf %338, %341 : vector<2x256xf32>
    %c0_157 = arith.constant 0 : index
    %c5_158 = arith.constant 5 : index
    %343 = memref.load %arg3[%c0_157, %c5_158] : memref<8x8xf32, #tpu.memory_space<smem>>
    %344 = vector.broadcast %343 : f32 to vector<2x256xf32>
    %345 = arith.mulf %344, %242 : vector<2x256xf32>
    %346 = arith.addf %342, %345 : vector<2x256xf32>
    %c0_159 = arith.constant 0 : index
    %c6_160 = arith.constant 6 : index
    %347 = memref.load %arg3[%c0_159, %c6_160] : memref<8x8xf32, #tpu.memory_space<smem>>
    %348 = vector.broadcast %347 : f32 to vector<2x256xf32>
    %349 = arith.mulf %348, %288 : vector<2x256xf32>
    %350 = arith.addf %346, %349 : vector<2x256xf32>
    %c0_161 = arith.constant 0 : index
    %c7_162 = arith.constant 7 : index
    %351 = memref.load %arg3[%c0_161, %c7_162] : memref<8x8xf32, #tpu.memory_space<smem>>
    %352 = vector.broadcast %351 : f32 to vector<2x256xf32>
    %353 = arith.mulf %352, %323 : vector<2x256xf32>
    %354 = arith.addf %350, %353 : vector<2x256xf32>
    %c0_163 = arith.constant 0 : index
    %355 = memref.load %arg4[%c0_163] : memref<8xf32, #tpu.memory_space<smem>>
    %356 = vector.broadcast %355 : f32 to vector<2x256xf32>
    %357 = arith.addf %354, %356 : vector<2x256xf32>
    %c0_164 = arith.constant 0 : index
    %c0_165 = arith.constant 0 : index
    %c0_166 = arith.constant 0 : index
    %358 = vector.load %arg5[%c0_164, %c0_165, %c0_166] : memref<8x2x256xf32, #tpu.memory_space<vmem>>, vector<1x2x256xf32>
    %359 = vector.shape_cast %358 : vector<1x2x256xf32> to vector<2x256xf32>
    %360 = vector.shape_cast %357 : vector<2x256xf32> to vector<1x2x256xf32>
    tpu.vector_store %arg5[%c0_164, %c0_165, %c0_166], %360 {strides = array<i32>} : memref<8x2x256xf32, #tpu.memory_space<vmem>>, vector<1x2x256xf32>,
    %c1_167 = arith.constant 1 : index
    %c0_168 = arith.constant 0 : index
    %361 = memref.load %arg3[%c1_167, %c0_168] : memref<8x8xf32, #tpu.memory_space<smem>>
    %362 = vector.broadcast %361 : f32 to vector<2x256xf32>
    %363 = arith.mulf %362, %45 : vector<2x256xf32>
    %c1_169 = arith.constant 1 : index
    %c1_170 = arith.constant 1 : index
    %364 = memref.load %arg3[%c1_169, %c1_170] : memref<8x8xf32, #tpu.memory_space<smem>>
    %365 = vector.broadcast %364 : f32 to vector<2x256xf32>
    %366 = arith.mulf %365, %80 : vector<2x256xf32>
    %367 = arith.addf %363, %366 : vector<2x256xf32>
    %c1_171 = arith.constant 1 : index
    %c2_172 = arith.constant 2 : index
    %368 = memref.load %arg3[%c1_171, %c2_172] : memref<8x8xf32, #tpu.memory_space<smem>>
    %369 = vector.broadcast %368 : f32 to vector<2x256xf32>
    %370 = arith.mulf %369, %126 : vector<2x256xf32>
    %371 = arith.addf %367, %370 : vector<2x256xf32>
    %c1_173 = arith.constant 1 : index
    %c3_174 = arith.constant 3 : index
    %372 = memref.load %arg3[%c1_173, %c3_174] : memref<8x8xf32, #tpu.memory_space<smem>>
    %373 = vector.broadcast %372 : f32 to vector<2x256xf32>
    %374 = arith.mulf %373, %161 : vector<2x256xf32>
    %375 = arith.addf %371, %374 : vector<2x256xf32>
    %c1_175 = arith.constant 1 : index
    %c4_176 = arith.constant 4 : index
    %376 = memref.load %arg3[%c1_175, %c4_176] : memref<8x8xf32, #tpu.memory_space<smem>>
    %377 = vector.broadcast %376 : f32 to vector<2x256xf32>
    %378 = arith.mulf %377, %207 : vector<2x256xf32>
    %379 = arith.addf %375, %378 : vector<2x256xf32>
    %c1_177 = arith.constant 1 : index
    %c5_178 = arith.constant 5 : index
    %380 = memref.load %arg3[%c1_177, %c5_178] : memref<8x8xf32, #tpu.memory_space<smem>>
    %381 = vector.broadcast %380 : f32 to vector<2x256xf32>
    %382 = arith.mulf %381, %242 : vector<2x256xf32>
    %383 = arith.addf %379, %382 : vector<2x256xf32>
    %c1_179 = arith.constant 1 : index
    %c6_180 = arith.constant 6 : index
    %384 = memref.load %arg3[%c1_179, %c6_180] : memref<8x8xf32, #tpu.memory_space<smem>>
    %385 = vector.broadcast %384 : f32 to vector<2x256xf32>
    %386 = arith.mulf %385, %288 : vector<2x256xf32>
    %387 = arith.addf %383, %386 : vector<2x256xf32>
    %c1_181 = arith.constant 1 : index
    %c7_182 = arith.constant 7 : index
    %388 = memref.load %arg3[%c1_181, %c7_182] : memref<8x8xf32, #tpu.memory_space<smem>>
    %389 = vector.broadcast %388 : f32 to vector<2x256xf32>
    %390 = arith.mulf %389, %323 : vector<2x256xf32>
    %391 = arith.addf %387, %390 : vector<2x256xf32>
    %c1_183 = arith.constant 1 : index
    %392 = memref.load %arg4[%c1_183] : memref<8xf32, #tpu.memory_space<smem>>
    %393 = vector.broadcast %392 : f32 to vector<2x256xf32>
    %394 = arith.addf %391, %393 : vector<2x256xf32>
    %c1_184 = arith.constant 1 : index
    %c0_185 = arith.constant 0 : index
    %c0_186 = arith.constant 0 : index
    %395 = vector.load %arg5[%c1_184, %c0_185, %c0_186] : memref<8x2x256xf32, #tpu.memory_space<vmem>>, vector<1x2x256xf32>
    %396 = vector.shape_cast %395 : vector<1x2x256xf32> to vector<2x256xf32>
    %397 = vector.shape_cast %394 : vector<2x256xf32> to vector<1x2x256xf32>
    tpu.vector_store %arg5[%c1_184, %c0_185, %c0_186], %397 {strides = array<i32>} : memref<8x2x256xf32, #tpu.memory_space<vmem>>, vector<1x2x256xf32>,
    %c2_187 = arith.constant 2 : index
    %c0_188 = arith.constant 0 : index
    %398 = memref.load %arg3[%c2_187, %c0_188] : memref<8x8xf32, #tpu.memory_space<smem>>
    %399 = vector.broadcast %398 : f32 to vector<2x256xf32>
    %400 = arith.mulf %399, %45 : vector<2x256xf32>
    %c2_189 = arith.constant 2 : index
    %c1_190 = arith.constant 1 : index
    %401 = memref.load %arg3[%c2_189, %c1_190] : memref<8x8xf32, #tpu.memory_space<smem>>
    %402 = vector.broadcast %401 : f32 to vector<2x256xf32>
    %403 = arith.mulf %402, %80 : vector<2x256xf32>
    %404 = arith.addf %400, %403 : vector<2x256xf32>
    %c2_191 = arith.constant 2 : index
    %c2_192 = arith.constant 2 : index
    %405 = memref.load %arg3[%c2_191, %c2_192] : memref<8x8xf32, #tpu.memory_space<smem>>
    %406 = vector.broadcast %405 : f32 to vector<2x256xf32>
    %407 = arith.mulf %406, %126 : vector<2x256xf32>
    %408 = arith.addf %404, %407 : vector<2x256xf32>
    %c2_193 = arith.constant 2 : index
    %c3_194 = arith.constant 3 : index
    %409 = memref.load %arg3[%c2_193, %c3_194] : memref<8x8xf32, #tpu.memory_space<smem>>
    %410 = vector.broadcast %409 : f32 to vector<2x256xf32>
    %411 = arith.mulf %410, %161 : vector<2x256xf32>
    %412 = arith.addf %408, %411 : vector<2x256xf32>
    %c2_195 = arith.constant 2 : index
    %c4_196 = arith.constant 4 : index
    %413 = memref.load %arg3[%c2_195, %c4_196] : memref<8x8xf32, #tpu.memory_space<smem>>
    %414 = vector.broadcast %413 : f32 to vector<2x256xf32>
    %415 = arith.mulf %414, %207 : vector<2x256xf32>
    %416 = arith.addf %412, %415 : vector<2x256xf32>
    %c2_197 = arith.constant 2 : index
    %c5_198 = arith.constant 5 : index
    %417 = memref.load %arg3[%c2_197, %c5_198] : memref<8x8xf32, #tpu.memory_space<smem>>
    %418 = vector.broadcast %417 : f32 to vector<2x256xf32>
    %419 = arith.mulf %418, %242 : vector<2x256xf32>
    %420 = arith.addf %416, %419 : vector<2x256xf32>
    %c2_199 = arith.constant 2 : index
    %c6_200 = arith.constant 6 : index
    %421 = memref.load %arg3[%c2_199, %c6_200] : memref<8x8xf32, #tpu.memory_space<smem>>
    %422 = vector.broadcast %421 : f32 to vector<2x256xf32>
    %423 = arith.mulf %422, %288 : vector<2x256xf32>
    %424 = arith.addf %420, %423 : vector<2x256xf32>
    %c2_201 = arith.constant 2 : index
    %c7_202 = arith.constant 7 : index
    %425 = memref.load %arg3[%c2_201, %c7_202] : memref<8x8xf32, #tpu.memory_space<smem>>
    %426 = vector.broadcast %425 : f32 to vector<2x256xf32>
    %427 = arith.mulf %426, %323 : vector<2x256xf32>
    %428 = arith.addf %424, %427 : vector<2x256xf32>
    %c2_203 = arith.constant 2 : index
    %429 = memref.load %arg4[%c2_203] : memref<8xf32, #tpu.memory_space<smem>>
    %430 = vector.broadcast %429 : f32 to vector<2x256xf32>
    %431 = arith.addf %428, %430 : vector<2x256xf32>
    %c2_204 = arith.constant 2 : index
    %c0_205 = arith.constant 0 : index
    %c0_206 = arith.constant 0 : index
    %432 = vector.load %arg5[%c2_204, %c0_205, %c0_206] : memref<8x2x256xf32, #tpu.memory_space<vmem>>, vector<1x2x256xf32>
    %433 = vector.shape_cast %432 : vector<1x2x256xf32> to vector<2x256xf32>
    %434 = vector.shape_cast %431 : vector<2x256xf32> to vector<1x2x256xf32>
    tpu.vector_store %arg5[%c2_204, %c0_205, %c0_206], %434 {strides = array<i32>} : memref<8x2x256xf32, #tpu.memory_space<vmem>>, vector<1x2x256xf32>,
    %c3_207 = arith.constant 3 : index
    %c0_208 = arith.constant 0 : index
    %435 = memref.load %arg3[%c3_207, %c0_208] : memref<8x8xf32, #tpu.memory_space<smem>>
    %436 = vector.broadcast %435 : f32 to vector<2x256xf32>
    %437 = arith.mulf %436, %45 : vector<2x256xf32>
    %c3_209 = arith.constant 3 : index
    %c1_210 = arith.constant 1 : index
    %438 = memref.load %arg3[%c3_209, %c1_210] : memref<8x8xf32, #tpu.memory_space<smem>>
    %439 = vector.broadcast %438 : f32 to vector<2x256xf32>
    %440 = arith.mulf %439, %80 : vector<2x256xf32>
    %441 = arith.addf %437, %440 : vector<2x256xf32>
    %c3_211 = arith.constant 3 : index
    %c2_212 = arith.constant 2 : index
    %442 = memref.load %arg3[%c3_211, %c2_212] : memref<8x8xf32, #tpu.memory_space<smem>>
    %443 = vector.broadcast %442 : f32 to vector<2x256xf32>
    %444 = arith.mulf %443, %126 : vector<2x256xf32>
    %445 = arith.addf %441, %444 : vector<2x256xf32>
    %c3_213 = arith.constant 3 : index
    %c3_214 = arith.constant 3 : index
    %446 = memref.load %arg3[%c3_213, %c3_214] : memref<8x8xf32, #tpu.memory_space<smem>>
    %447 = vector.broadcast %446 : f32 to vector<2x256xf32>
    %448 = arith.mulf %447, %161 : vector<2x256xf32>
    %449 = arith.addf %445, %448 : vector<2x256xf32>
    %c3_215 = arith.constant 3 : index
    %c4_216 = arith.constant 4 : index
    %450 = memref.load %arg3[%c3_215, %c4_216] : memref<8x8xf32, #tpu.memory_space<smem>>
    %451 = vector.broadcast %450 : f32 to vector<2x256xf32>
    %452 = arith.mulf %451, %207 : vector<2x256xf32>
    %453 = arith.addf %449, %452 : vector<2x256xf32>
    %c3_217 = arith.constant 3 : index
    %c5_218 = arith.constant 5 : index
    %454 = memref.load %arg3[%c3_217, %c5_218] : memref<8x8xf32, #tpu.memory_space<smem>>
    %455 = vector.broadcast %454 : f32 to vector<2x256xf32>
    %456 = arith.mulf %455, %242 : vector<2x256xf32>
    %457 = arith.addf %453, %456 : vector<2x256xf32>
    %c3_219 = arith.constant 3 : index
    %c6_220 = arith.constant 6 : index
    %458 = memref.load %arg3[%c3_219, %c6_220] : memref<8x8xf32, #tpu.memory_space<smem>>
    %459 = vector.broadcast %458 : f32 to vector<2x256xf32>
    %460 = arith.mulf %459, %288 : vector<2x256xf32>
    %461 = arith.addf %457, %460 : vector<2x256xf32>
    %c3_221 = arith.constant 3 : index
    %c7_222 = arith.constant 7 : index
    %462 = memref.load %arg3[%c3_221, %c7_222] : memref<8x8xf32, #tpu.memory_space<smem>>
    %463 = vector.broadcast %462 : f32 to vector<2x256xf32>
    %464 = arith.mulf %463, %323 : vector<2x256xf32>
    %465 = arith.addf %461, %464 : vector<2x256xf32>
    %c3_223 = arith.constant 3 : index
    %466 = memref.load %arg4[%c3_223] : memref<8xf32, #tpu.memory_space<smem>>
    %467 = vector.broadcast %466 : f32 to vector<2x256xf32>
    %468 = arith.addf %465, %467 : vector<2x256xf32>
    %c3_224 = arith.constant 3 : index
    %c0_225 = arith.constant 0 : index
    %c0_226 = arith.constant 0 : index
    %469 = vector.load %arg5[%c3_224, %c0_225, %c0_226] : memref<8x2x256xf32, #tpu.memory_space<vmem>>, vector<1x2x256xf32>
    %470 = vector.shape_cast %469 : vector<1x2x256xf32> to vector<2x256xf32>
    %471 = vector.shape_cast %468 : vector<2x256xf32> to vector<1x2x256xf32>
    tpu.vector_store %arg5[%c3_224, %c0_225, %c0_226], %471 {strides = array<i32>} : memref<8x2x256xf32, #tpu.memory_space<vmem>>, vector<1x2x256xf32>,
    %c4_227 = arith.constant 4 : index
    %c0_228 = arith.constant 0 : index
    %472 = memref.load %arg3[%c4_227, %c0_228] : memref<8x8xf32, #tpu.memory_space<smem>>
    %473 = vector.broadcast %472 : f32 to vector<2x256xf32>
    %474 = arith.mulf %473, %45 : vector<2x256xf32>
    %c4_229 = arith.constant 4 : index
    %c1_230 = arith.constant 1 : index
    %475 = memref.load %arg3[%c4_229, %c1_230] : memref<8x8xf32, #tpu.memory_space<smem>>
    %476 = vector.broadcast %475 : f32 to vector<2x256xf32>
    %477 = arith.mulf %476, %80 : vector<2x256xf32>
    %478 = arith.addf %474, %477 : vector<2x256xf32>
    %c4_231 = arith.constant 4 : index
    %c2_232 = arith.constant 2 : index
    %479 = memref.load %arg3[%c4_231, %c2_232] : memref<8x8xf32, #tpu.memory_space<smem>>
    %480 = vector.broadcast %479 : f32 to vector<2x256xf32>
    %481 = arith.mulf %480, %126 : vector<2x256xf32>
    %482 = arith.addf %478, %481 : vector<2x256xf32>
    %c4_233 = arith.constant 4 : index
    %c3_234 = arith.constant 3 : index
    %483 = memref.load %arg3[%c4_233, %c3_234] : memref<8x8xf32, #tpu.memory_space<smem>>
    %484 = vector.broadcast %483 : f32 to vector<2x256xf32>
    %485 = arith.mulf %484, %161 : vector<2x256xf32>
    %486 = arith.addf %482, %485 : vector<2x256xf32>
    %c4_235 = arith.constant 4 : index
    %c4_236 = arith.constant 4 : index
    %487 = memref.load %arg3[%c4_235, %c4_236] : memref<8x8xf32, #tpu.memory_space<smem>>
    %488 = vector.broadcast %487 : f32 to vector<2x256xf32>
    %489 = arith.mulf %488, %207 : vector<2x256xf32>
    %490 = arith.addf %486, %489 : vector<2x256xf32>
    %c4_237 = arith.constant 4 : index
    %c5_238 = arith.constant 5 : index
    %491 = memref.load %arg3[%c4_237, %c5_238] : memref<8x8xf32, #tpu.memory_space<smem>>
    %492 = vector.broadcast %491 : f32 to vector<2x256xf32>
    %493 = arith.mulf %492, %242 : vector<2x256xf32>
    %494 = arith.addf %490, %493 : vector<2x256xf32>
    %c4_239 = arith.constant 4 : index
    %c6_240 = arith.constant 6 : index
    %495 = memref.load %arg3[%c4_239, %c6_240] : memref<8x8xf32, #tpu.memory_space<smem>>
    %496 = vector.broadcast %495 : f32 to vector<2x256xf32>
    %497 = arith.mulf %496, %288 : vector<2x256xf32>
    %498 = arith.addf %494, %497 : vector<2x256xf32>
    %c4_241 = arith.constant 4 : index
    %c7_242 = arith.constant 7 : index
    %499 = memref.load %arg3[%c4_241, %c7_242] : memref<8x8xf32, #tpu.memory_space<smem>>
    %500 = vector.broadcast %499 : f32 to vector<2x256xf32>
    %501 = arith.mulf %500, %323 : vector<2x256xf32>
    %502 = arith.addf %498, %501 : vector<2x256xf32>
    %c4_243 = arith.constant 4 : index
    %503 = memref.load %arg4[%c4_243] : memref<8xf32, #tpu.memory_space<smem>>
    %504 = vector.broadcast %503 : f32 to vector<2x256xf32>
    %505 = arith.addf %502, %504 : vector<2x256xf32>
    %c4_244 = arith.constant 4 : index
    %c0_245 = arith.constant 0 : index
    %c0_246 = arith.constant 0 : index
    %506 = vector.load %arg5[%c4_244, %c0_245, %c0_246] : memref<8x2x256xf32, #tpu.memory_space<vmem>>, vector<1x2x256xf32>
    %507 = vector.shape_cast %506 : vector<1x2x256xf32> to vector<2x256xf32>
    %508 = vector.shape_cast %505 : vector<2x256xf32> to vector<1x2x256xf32>
    tpu.vector_store %arg5[%c4_244, %c0_245, %c0_246], %508 {strides = array<i32>} : memref<8x2x256xf32, #tpu.memory_space<vmem>>, vector<1x2x256xf32>,
    %c5_247 = arith.constant 5 : index
    %c0_248 = arith.constant 0 : index
    %509 = memref.load %arg3[%c5_247, %c0_248] : memref<8x8xf32, #tpu.memory_space<smem>>
    %510 = vector.broadcast %509 : f32 to vector<2x256xf32>
    %511 = arith.mulf %510, %45 : vector<2x256xf32>
    %c5_249 = arith.constant 5 : index
    %c1_250 = arith.constant 1 : index
    %512 = memref.load %arg3[%c5_249, %c1_250] : memref<8x8xf32, #tpu.memory_space<smem>>
    %513 = vector.broadcast %512 : f32 to vector<2x256xf32>
    %514 = arith.mulf %513, %80 : vector<2x256xf32>
    %515 = arith.addf %511, %514 : vector<2x256xf32>
    %c5_251 = arith.constant 5 : index
    %c2_252 = arith.constant 2 : index
    %516 = memref.load %arg3[%c5_251, %c2_252] : memref<8x8xf32, #tpu.memory_space<smem>>
    %517 = vector.broadcast %516 : f32 to vector<2x256xf32>
    %518 = arith.mulf %517, %126 : vector<2x256xf32>
    %519 = arith.addf %515, %518 : vector<2x256xf32>
    %c5_253 = arith.constant 5 : index
    %c3_254 = arith.constant 3 : index
    %520 = memref.load %arg3[%c5_253, %c3_254] : memref<8x8xf32, #tpu.memory_space<smem>>
    %521 = vector.broadcast %520 : f32 to vector<2x256xf32>
    %522 = arith.mulf %521, %161 : vector<2x256xf32>
    %523 = arith.addf %519, %522 : vector<2x256xf32>
    %c5_255 = arith.constant 5 : index
    %c4_256 = arith.constant 4 : index
    %524 = memref.load %arg3[%c5_255, %c4_256] : memref<8x8xf32, #tpu.memory_space<smem>>
    %525 = vector.broadcast %524 : f32 to vector<2x256xf32>
    %526 = arith.mulf %525, %207 : vector<2x256xf32>
    %527 = arith.addf %523, %526 : vector<2x256xf32>
    %c5_257 = arith.constant 5 : index
    %c5_258 = arith.constant 5 : index
    %528 = memref.load %arg3[%c5_257, %c5_258] : memref<8x8xf32, #tpu.memory_space<smem>>
    %529 = vector.broadcast %528 : f32 to vector<2x256xf32>
    %530 = arith.mulf %529, %242 : vector<2x256xf32>
    %531 = arith.addf %527, %530 : vector<2x256xf32>
    %c5_259 = arith.constant 5 : index
    %c6_260 = arith.constant 6 : index
    %532 = memref.load %arg3[%c5_259, %c6_260] : memref<8x8xf32, #tpu.memory_space<smem>>
    %533 = vector.broadcast %532 : f32 to vector<2x256xf32>
    %534 = arith.mulf %533, %288 : vector<2x256xf32>
    %535 = arith.addf %531, %534 : vector<2x256xf32>
    %c5_261 = arith.constant 5 : index
    %c7_262 = arith.constant 7 : index
    %536 = memref.load %arg3[%c5_261, %c7_262] : memref<8x8xf32, #tpu.memory_space<smem>>
    %537 = vector.broadcast %536 : f32 to vector<2x256xf32>
    %538 = arith.mulf %537, %323 : vector<2x256xf32>
    %539 = arith.addf %535, %538 : vector<2x256xf32>
    %c5_263 = arith.constant 5 : index
    %540 = memref.load %arg4[%c5_263] : memref<8xf32, #tpu.memory_space<smem>>
    %541 = vector.broadcast %540 : f32 to vector<2x256xf32>
    %542 = arith.addf %539, %541 : vector<2x256xf32>
    %c5_264 = arith.constant 5 : index
    %c0_265 = arith.constant 0 : index
    %c0_266 = arith.constant 0 : index
    %543 = vector.load %arg5[%c5_264, %c0_265, %c0_266] : memref<8x2x256xf32, #tpu.memory_space<vmem>>, vector<1x2x256xf32>
    %544 = vector.shape_cast %543 : vector<1x2x256xf32> to vector<2x256xf32>
    %545 = vector.shape_cast %542 : vector<2x256xf32> to vector<1x2x256xf32>
    tpu.vector_store %arg5[%c5_264, %c0_265, %c0_266], %545 {strides = array<i32>} : memref<8x2x256xf32, #tpu.memory_space<vmem>>, vector<1x2x256xf32>,
    %c6_267 = arith.constant 6 : index
    %c0_268 = arith.constant 0 : index
    %546 = memref.load %arg3[%c6_267, %c0_268] : memref<8x8xf32, #tpu.memory_space<smem>>
    %547 = vector.broadcast %546 : f32 to vector<2x256xf32>
    %548 = arith.mulf %547, %45 : vector<2x256xf32>
    %c6_269 = arith.constant 6 : index
    %c1_270 = arith.constant 1 : index
    %549 = memref.load %arg3[%c6_269, %c1_270] : memref<8x8xf32, #tpu.memory_space<smem>>
    %550 = vector.broadcast %549 : f32 to vector<2x256xf32>
    %551 = arith.mulf %550, %80 : vector<2x256xf32>
    %552 = arith.addf %548, %551 : vector<2x256xf32>
    %c6_271 = arith.constant 6 : index
    %c2_272 = arith.constant 2 : index
    %553 = memref.load %arg3[%c6_271, %c2_272] : memref<8x8xf32, #tpu.memory_space<smem>>
    %554 = vector.broadcast %553 : f32 to vector<2x256xf32>
    %555 = arith.mulf %554, %126 : vector<2x256xf32>
    %556 = arith.addf %552, %555 : vector<2x256xf32>
    %c6_273 = arith.constant 6 : index
    %c3_274 = arith.constant 3 : index
    %557 = memref.load %arg3[%c6_273, %c3_274] : memref<8x8xf32, #tpu.memory_space<smem>>
    %558 = vector.broadcast %557 : f32 to vector<2x256xf32>
    %559 = arith.mulf %558, %161 : vector<2x256xf32>
    %560 = arith.addf %556, %559 : vector<2x256xf32>
    %c6_275 = arith.constant 6 : index
    %c4_276 = arith.constant 4 : index
    %561 = memref.load %arg3[%c6_275, %c4_276] : memref<8x8xf32, #tpu.memory_space<smem>>
    %562 = vector.broadcast %561 : f32 to vector<2x256xf32>
    %563 = arith.mulf %562, %207 : vector<2x256xf32>
    %564 = arith.addf %560, %563 : vector<2x256xf32>
    %c6_277 = arith.constant 6 : index
    %c5_278 = arith.constant 5 : index
    %565 = memref.load %arg3[%c6_277, %c5_278] : memref<8x8xf32, #tpu.memory_space<smem>>
    %566 = vector.broadcast %565 : f32 to vector<2x256xf32>
    %567 = arith.mulf %566, %242 : vector<2x256xf32>
    %568 = arith.addf %564, %567 : vector<2x256xf32>
    %c6_279 = arith.constant 6 : index
    %c6_280 = arith.constant 6 : index
    %569 = memref.load %arg3[%c6_279, %c6_280] : memref<8x8xf32, #tpu.memory_space<smem>>
    %570 = vector.broadcast %569 : f32 to vector<2x256xf32>
    %571 = arith.mulf %570, %288 : vector<2x256xf32>
    %572 = arith.addf %568, %571 : vector<2x256xf32>
    %c6_281 = arith.constant 6 : index
    %c7_282 = arith.constant 7 : index
    %573 = memref.load %arg3[%c6_281, %c7_282] : memref<8x8xf32, #tpu.memory_space<smem>>
    %574 = vector.broadcast %573 : f32 to vector<2x256xf32>
    %575 = arith.mulf %574, %323 : vector<2x256xf32>
    %576 = arith.addf %572, %575 : vector<2x256xf32>
    %c6_283 = arith.constant 6 : index
    %577 = memref.load %arg4[%c6_283] : memref<8xf32, #tpu.memory_space<smem>>
    %578 = vector.broadcast %577 : f32 to vector<2x256xf32>
    %579 = arith.addf %576, %578 : vector<2x256xf32>
    %c6_284 = arith.constant 6 : index
    %c0_285 = arith.constant 0 : index
    %c0_286 = arith.constant 0 : index
    %580 = vector.load %arg5[%c6_284, %c0_285, %c0_286] : memref<8x2x256xf32, #tpu.memory_space<vmem>>, vector<1x2x256xf32>
    %581 = vector.shape_cast %580 : vector<1x2x256xf32> to vector<2x256xf32>
    %582 = vector.shape_cast %579 : vector<2x256xf32> to vector<1x2x256xf32>
    tpu.vector_store %arg5[%c6_284, %c0_285, %c0_286], %582 {strides = array<i32>} : memref<8x2x256xf32, #tpu.memory_space<vmem>>, vector<1x2x256xf32>,
    %c7_287 = arith.constant 7 : index
    %c0_288 = arith.constant 0 : index
    %583 = memref.load %arg3[%c7_287, %c0_288] : memref<8x8xf32, #tpu.memory_space<smem>>
    %584 = vector.broadcast %583 : f32 to vector<2x256xf32>
    %585 = arith.mulf %584, %45 : vector<2x256xf32>
    %c7_289 = arith.constant 7 : index
    %c1_290 = arith.constant 1 : index
    %586 = memref.load %arg3[%c7_289, %c1_290] : memref<8x8xf32, #tpu.memory_space<smem>>
    %587 = vector.broadcast %586 : f32 to vector<2x256xf32>
    %588 = arith.mulf %587, %80 : vector<2x256xf32>
    %589 = arith.addf %585, %588 : vector<2x256xf32>
    %c7_291 = arith.constant 7 : index
    %c2_292 = arith.constant 2 : index
    %590 = memref.load %arg3[%c7_291, %c2_292] : memref<8x8xf32, #tpu.memory_space<smem>>
    %591 = vector.broadcast %590 : f32 to vector<2x256xf32>
    %592 = arith.mulf %591, %126 : vector<2x256xf32>
    %593 = arith.addf %589, %592 : vector<2x256xf32>
    %c7_293 = arith.constant 7 : index
    %c3_294 = arith.constant 3 : index
    %594 = memref.load %arg3[%c7_293, %c3_294] : memref<8x8xf32, #tpu.memory_space<smem>>
    %595 = vector.broadcast %594 : f32 to vector<2x256xf32>
    %596 = arith.mulf %595, %161 : vector<2x256xf32>
    %597 = arith.addf %593, %596 : vector<2x256xf32>
    %c7_295 = arith.constant 7 : index
    %c4_296 = arith.constant 4 : index
    %598 = memref.load %arg3[%c7_295, %c4_296] : memref<8x8xf32, #tpu.memory_space<smem>>
    %599 = vector.broadcast %598 : f32 to vector<2x256xf32>
    %600 = arith.mulf %599, %207 : vector<2x256xf32>
    %601 = arith.addf %597, %600 : vector<2x256xf32>
    %c7_297 = arith.constant 7 : index
    %c5_298 = arith.constant 5 : index
    %602 = memref.load %arg3[%c7_297, %c5_298] : memref<8x8xf32, #tpu.memory_space<smem>>
    %603 = vector.broadcast %602 : f32 to vector<2x256xf32>
    %604 = arith.mulf %603, %242 : vector<2x256xf32>
    %605 = arith.addf %601, %604 : vector<2x256xf32>
    %c7_299 = arith.constant 7 : index
    %c6_300 = arith.constant 6 : index
    %606 = memref.load %arg3[%c7_299, %c6_300] : memref<8x8xf32, #tpu.memory_space<smem>>
    %607 = vector.broadcast %606 : f32 to vector<2x256xf32>
    %608 = arith.mulf %607, %288 : vector<2x256xf32>
    %609 = arith.addf %605, %608 : vector<2x256xf32>
    %c7_301 = arith.constant 7 : index
    %c7_302 = arith.constant 7 : index
    %610 = memref.load %arg3[%c7_301, %c7_302] : memref<8x8xf32, #tpu.memory_space<smem>>
    %611 = vector.broadcast %610 : f32 to vector<2x256xf32>
    %612 = arith.mulf %611, %323 : vector<2x256xf32>
    %613 = arith.addf %609, %612 : vector<2x256xf32>
    %c7_303 = arith.constant 7 : index
    %614 = memref.load %arg4[%c7_303] : memref<8xf32, #tpu.memory_space<smem>>
    %615 = vector.broadcast %614 : f32 to vector<2x256xf32>
    %616 = arith.addf %613, %615 : vector<2x256xf32>
    %c7_304 = arith.constant 7 : index
    %c0_305 = arith.constant 0 : index
    %c0_306 = arith.constant 0 : index
    %617 = vector.load %arg5[%c7_304, %c0_305, %c0_306] : memref<8x2x256xf32, #tpu.memory_space<vmem>>, vector<1x2x256xf32>
    %618 = vector.shape_cast %617 : vector<1x2x256xf32> to vector<2x256xf32>
    %619 = vector.shape_cast %616 : vector<2x256xf32> to vector<1x2x256xf32>
    tpu.vector_store %arg5[%c7_304, %c0_305, %c0_306], %619 {strides = array<i32>} : memref<8x2x256xf32, #tpu.memory_space<vmem>>, vector<1x2x256xf32>,
    return
  }
  func.func @transform_0(%arg0: i32) -> (i32, i32, i32) {
    %c0_i32 = arith.constant 0 : i32
    %c0_i32_0 = arith.constant 0 : i32
    %c0_i32_1 = arith.constant 0 : i32
    return %c0_i32, %arg0, %c0_i32_0 : i32, i32, i32
  }
  func.func @transform_1(%arg0: i32) -> (i32, i32) {
    %c0_i32 = arith.constant 0 : i32
    %c0_i32_0 = arith.constant 0 : i32
    %c0_i32_1 = arith.constant 0 : i32
    return %c0_i32, %c0_i32_0 : i32, i32
  }
  func.func @transform_2(%arg0: i32) -> (i32, i32) {
    %c0_i32 = arith.constant 0 : i32
    %c0_i32_0 = arith.constant 0 : i32
    %c0_i32_1 = arith.constant 0 : i32
    return %c0_i32, %c0_i32_0 : i32, i32
  }
  func.func @transform_3(%arg0: i32) -> i32 {
    %c0_i32 = arith.constant 0 : i32
    %c0_i32_0 = arith.constant 0 : i32
    return %c0_i32 : i32
  }
  func.func @transform_4(%arg0: i32) -> (i32, i32, i32) {
    %c0_i32 = arith.constant 0 : i32
    %c0_i32_0 = arith.constant 0 : i32
    %c0_i32_1 = arith.constant 0 : i32
    return %c0_i32, %arg0, %c0_i32_0 : i32, i32, i32
  }
}

</mosaic_0001>

<llo_original>
// kernel: tpu_custom_call.1
$region0: #{tpu_custom_call.1}
  #allocation0 [shape = 'u32[]', space=smem, size = 0x4, offset = 0x4, fixed_abs, tag = 'smem constant byte address 0x4 - core index']
  #allocation1 [shape = 'u32[72,128]{1,0:T(1,128)}', space=vmem, size = 0x9000, scoped, tag = 'internal scratch']
  %s0 = inlined_call_operand.hbm [shape: f32[4,2,290], index: 0, kind: input, shape index: {}]
  %s1 = inlined_call_operand.hbm [shape: f32[8,9], index: 1, kind: input, shape index: {}]
  %s2 = inlined_call_operand.hbm [shape: f32[8,8], index: 2, kind: input, shape index: {}]
  %s3 = inlined_call_operand.vmem [shape: f32[8], index: 3, kind: input, shape index: {}]
  %s4 = inlined_call_operand.hbm [shape: f32[8,2,256], index: 4, kind: output, shape index: {}]
  %s5 = sld [smem:[#allocation0]]
  $region42: #{tpu_custom_call.1} parent=0
    _
  %s7 = ssub.s32 1, %s5
  %s8 = scalar_select 0, %s7, %s5
  $region1: #{tpu_custom_call.1} parent=0
    #allocation2 [shape = 'u8[12288]{0}', space=vmem, size = 0x3000, scoped, tag = 'input window, operand 0, single buffered']
    #allocation3 [shape = 's32[1]{0}', space=sflag, size = 0x4, scoped, tag = 'scoped memory for tpu_custom_call.1']
    #allocation4 [shape = 's32[1]{0}', space=sflag, size = 0x4, scoped, tag = 'scoped memory for tpu_custom_call.1']
    #allocation5 [shape = 's32[1]{0}', space=sflag, size = 0x4, scoped, tag = 'scoped memory for tpu_custom_call.1']
    #allocation6 [shape = 's32[1]{0}', space=sflag, size = 0x4, scoped, tag = 'scoped memory for tpu_custom_call.1']
    #allocation7 [shape = 'u8[4096]{0}', space=smem, size = 0x1000, scoped, tag = 'input window, operand 1, single buffered']
    #allocation8 [shape = 'u8[4096]{0}', space=smem, size = 0x1000, scoped, tag = 'input window, operand 2, single buffered']
    #allocation9 [shape = 's32[1]{0}', space=sflag, size = 0x4, scoped, tag = 'scoped memory for tpu_custom_call.1']
    #allocation10 [shape = 'u8[512]{0}', space=smem, size = 0x200, scoped, tag = 'input window, operand 3, single buffered']
    #allocation11 [shape = 'u8[16384]{0}', space=vmem, size = 0x4000, scoped, tag = 'output window, operand 0, single buffered']
    %9 = vsyncpa [#allocation3], 0
    %10 = vsyncpa [#allocation5], 0
    %11 = vsyncpa [#allocation9], 0
    %12 = vsyncpa [#allocation6], 0
    %13 = vsyncpa [#allocation4], 0
    // Predicated region
    $region2: #{tpu_custom_call.1} parent=1 // pred_check
      _
    $region3: #{tpu_custom_call.1} parent=1 // pred_check_branch
      %15 = sbr.rel (0) target = $region5
    $region4: #{tpu_custom_call.1} parent=1 // pred_region
      %17 = vsyncadd [#allocation3], 0
      %s18 = sshll.u32 %s0, 4
      %s19 = int_to_ptr.hbm [resolvable:$true] %s18
      %s20 = sshll.u32 [#allocation2], 4
      %s21 = int_to_ptr.vmem [resolvable:$true] %s20
      %26 = dma.hbm_to_vmem [thread:$0]  %s19, 384, %s21, [#allocation3], 96, 96, 6
    $region5: #{tpu_custom_call.1} parent=1 // pred_fallthru
      _
    // Predicated region
    $region6: #{tpu_custom_call.1} parent=1 // pred_check
      _
    $region7: #{tpu_custom_call.1} parent=1 // pred_check_branch
      %28 = sbr.rel (0) target = $region9
    $region8: #{tpu_custom_call.1} parent=1 // pred_region
      %30 = vsyncadd [#allocation5], 0
      %s32 = sshll.u32 %s1, 4
      %s33 = int_to_ptr.hbm [resolvable:$true] %s32
      %35 = dma.hbm_to_smem %s33, 128, [#allocation7], [#allocation5]
    $region9: #{tpu_custom_call.1} parent=1 // pred_fallthru
      _
    // Predicated region
    $region10: #{tpu_custom_call.1} parent=1 // pred_check
      _
    $region11: #{tpu_custom_call.1} parent=1 // pred_check_branch
      %37 = sbr.rel (0) target = $region13
    $region12: #{tpu_custom_call.1} parent=1 // pred_region
      %39 = vsyncadd [#allocation9], 0
      %s41 = sshll.u32 %s2, 4
      %s42 = int_to_ptr.hbm [resolvable:$true] %s41
      %44 = dma.hbm_to_smem %s42, 128, [#allocation8], [#allocation9]
    $region13: #{tpu_custom_call.1} parent=1 // pred_fallthru
      _
    // Predicated region
    $region14: #{tpu_custom_call.1} parent=1 // pred_check
      _
    $region15: #{tpu_custom_call.1} parent=1 // pred_check_branch
      %46 = sbr.rel (0) target = $region17
    $region16: #{tpu_custom_call.1} parent=1 // pred_region
      %48 = vsyncadd [#allocation6], 0
      %s50 = sshll.u32 %s3, 4
      %s51 = int_to_ptr.vmem [resolvable:$true] %s50
      %53 = dma.vmem_to_smem %s51, 16, [#allocation10], [#allocation6]
    $region17: #{tpu_custom_call.1} parent=1 // pred_fallthru
      _
    // Predicated region
    $region18: #{tpu_custom_call.1} parent=1 // pred_check
      _
    $region19: #{tpu_custom_call.1} parent=1 // pred_check_branch
      %55 = sbr.rel (0) target = $region21
    $region20: #{tpu_custom_call.1} parent=1 // pred_region
      %57 = dma.done [#allocation3], 384
    $region21: #{tpu_custom_call.1} parent=1 // pred_fallthru
      _
    // Predicated region
    $region22: #{tpu_custom_call.1} parent=1 // pred_check
      _
    $region23: #{tpu_custom_call.1} parent=1 // pred_check_branch
      %59 = sbr.rel (0) target = $region25
    $region24: #{tpu_custom_call.1} parent=1 // pred_region
      %61 = dma.done [#allocation5], 128
    $region25: #{tpu_custom_call.1} parent=1 // pred_fallthru
      _
    // Predicated region
    $region26: #{tpu_custom_call.1} parent=1 // pred_check
      _
    $region27: #{tpu_custom_call.1} parent=1 // pred_check_branch
      %63 = sbr.rel (0) target = $region29
    $region28: #{tpu_custom_call.1} parent=1 // pred_region
      %65 = dma.done [#allocation9], 128
    $region29: #{tpu_custom_call.1} parent=1 // pred_fallthru
      _
    // Predicated region
    $region30: #{tpu_custom_call.1} parent=1 // pred_check
      _
    $region31: #{tpu_custom_call.1} parent=1 // pred_check_branch
      %67 = sbr.rel (0) target = $region33
    $region32: #{tpu_custom_call.1} parent=1 // pred_region
      %69 = dma.done [#allocation6], 16
    $region33: #{tpu_custom_call.1} parent=1 // pred_fallthru
      _
    %70 = sfence
    %v71 = vld [vmem:[#allocation2] sm:$0x3f]
    %s72 = sld [smem:[#allocation7]]
    %v73 = vstv %s72
    %v74 = vmul.f32 %v73, %v71
    %s75 = sld [smem:[#allocation7 + $0x1]]
    %v76 = vstv %s75
    %v77 = vmul.f32 %v76, %v71
    %79 = vrot.lane.b32.xlu0 %v77, 127
    %v80 = vpop.permute.xlu0 %79
    %v81 = vrot.slane %v80, 2
    %vm82 = vcmask 1039360
    %v83 = vsel %vm82, %v80, %v81
    %v85 = vadd.f32 %v74, %v83
    %s86 = sld [smem:[#allocation7 + $0x2]]
    %v87 = vstv %s86
    %v88 = vmul.f32 %v87, %v71
    %90 = vrot.lane.b32.xlu0 %v88, 126
    %v91 = vpop.permute.xlu0 %90
    %v92 = vrot.slane %v91, 2
    %vm93 = vcmask 1031168
    %v94 = vsel %vm93, %v91, %v92
    %v96 = vadd.f32 %v85, %v94
    %s97 = sld [smem:[#allocation7 + $0x3]]
    %v98 = vstv %s97
    %v99 = vmul.f32 %v98, %v71
    %101 = vrot.lane.b32.xlu0 %v99, 112
    %v102 = vpop.permute.xlu0 %101
    %v103 = vrot.slane %v102, 2
    %vm104 = vcmask 916480
    %v105 = vsel %vm104, %v102, %v103
    %v107 = vadd.f32 %v96, %v105
    %s108 = sld [smem:[#allocation7 + $0x4]]
    %v109 = vstv %s108
    %v110 = vmul.f32 %v109, %v71
    %112 = vrot.lane.b32.xlu0 %v110, 111
    %v113 = vpop.permute.xlu0 %112
    %v114 = vrot.slane %v113, 2
    %vm115 = vcmask 908288
    %v116 = vsel %vm115, %v113, %v114
    %v118 = vadd.f32 %v107, %v116
    %s119 = sld [smem:[#allocation7 + $0x5]]
    %v120 = vstv %s119
    %v121 = vmul.f32 %v120, %v71
    %123 = vrot.lane.b32.xlu0 %v121, 110
    %v124 = vpop.permute.xlu0 %123
    %v125 = vrot.slane %v124, 2
    %vm126 = vcmask 900096
    %v127 = vsel %vm126, %v124, %v125
    %v129 = vadd.f32 %v118, %v127
    %s130 = sld [smem:[#allocation7 + $0x6]]
    %v131 = vstv %s130
    %v132 = vmul.f32 %v131, %v71
    %134 = vrot.lane.b32.xlu0 %v132, 96
    %v135 = vpop.permute.xlu0 %134
    %v136 = vrot.slane %v135, 2
    %vm137 = vcmask 785408
    %v138 = vsel %vm137, %v135, %v136
    %v140 = vadd.f32 %v129, %v138
    %s141 = sld [smem:[#allocation7 + $0x7]]
    %v142 = vstv %s141
    %v143 = vmul.f32 %v142, %v71
    %145 = vrot.lane.b32.xlu0 %v143, 95
    %v146 = vpop.permute.xlu0 %145
    %v147 = vrot.slane %v146, 2
    %vm148 = vcmask 777216
    %v149 = vsel %vm148, %v146, %v147
    %v151 = vadd.f32 %v140, %v149
    %s152 = sld [smem:[#allocation7 + $0x8]]
    %v153 = vstv %s152
    %v154 = vmul.f32 %v153, %v71
    %156 = vrot.lane.b32.xlu0 %v154, 94
    %v157 = vpop.permute.xlu0 %156
    %v158 = vrot.slane %v157, 2
    %vm159 = vcmask 769024
    %v160 = vsel %vm159, %v157, %v158
    %v162 = vadd.f32 %v151, %v160
    %s163 = sld [smem:[#allocation7 + $0x80]]
    %v164 = vstv %s163
    %v165 = vmul.f32 %v164, %v71
    %s166 = sld [smem:[#allocation7 + $0x81]]
    %v167 = vstv %s166
    %v168 = vmul.f32 %v167, %v71
    %170 = vrot.lane.b32.xlu0 %v168, 127
    %v171 = vpop.permute.xlu0 %170
    %v172 = vrot.slane %v171, 2
    %v173 = vsel %vm82, %v171, %v172
    %v175 = vadd.f32 %v165, %v173
    %s176 = sld [smem:[#allocation7 + $0x82]]
    %v177 = vstv %s176
    %v178 = vmul.f32 %v177, %v71
    %180 = vrot.lane.b32.xlu0 %v178, 126
    %v181 = vpop.permute.xlu0 %180
    %v182 = vrot.slane %v181, 2
    %v183 = vsel %vm93, %v181, %v182
    %v185 = vadd.f32 %v175, %v183
    %s186 = sld [smem:[#allocation7 + $0x83]]
    %v187 = vstv %s186
    %v188 = vmul.f32 %v187, %v71
    %190 = vrot.lane.b32.xlu0 %v188, 112
    %v191 = vpop.permute.xlu0 %190
    %v192 = vrot.slane %v191, 2
    %v193 = vsel %vm104, %v191, %v192
    %v195 = vadd.f32 %v185, %v193
    %s196 = sld [smem:[#allocation7 + $0x84]]
    %v197 = vstv %s196
    %v198 = vmul.f32 %v197, %v71
    %200 = vrot.lane.b32.xlu0 %v198, 111
    %v201 = vpop.permute.xlu0 %200
    %v202 = vrot.slane %v201, 2
    %v203 = vsel %vm115, %v201, %v202
    %v205 = vadd.f32 %v195, %v203
    %s206 = sld [smem:[#allocation7 + $0x85]]
    %v207 = vstv %s206
    %v208 = vmul.f32 %v207, %v71
    %210 = vrot.lane.b32.xlu0 %v208, 110
    %v211 = vpop.permute.xlu0 %210
    %v212 = vrot.slane %v211, 2
    %v213 = vsel %vm126, %v211, %v212
    %v215 = vadd.f32 %v205, %v213
    %s216 = sld [smem:[#allocation7 + $0x86]]
    %v217 = vstv %s216
    %v218 = vmul.f32 %v217, %v71
    %220 = vrot.lane.b32.xlu0 %v218, 96
    %v221 = vpop.permute.xlu0 %220
    %v222 = vrot.slane %v221, 2
    %v223 = vsel %vm137, %v221, %v222
    %v225 = vadd.f32 %v215, %v223
    %s226 = sld [smem:[#allocation7 + $0x87]]
    %v227 = vstv %s226
    %v228 = vmul.f32 %v227, %v71
    %230 = vrot.lane.b32.xlu0 %v228, 95
    %v231 = vpop.permute.xlu0 %230
    %v232 = vrot.slane %v231, 2
    %v233 = vsel %vm148, %v231, %v232
    %v235 = vadd.f32 %v225, %v233
    %s236 = sld [smem:[#allocation7 + $0x88]]
    %v237 = vstv %s236
    %v238 = vmul.f32 %v237, %v71
    %240 = vrot.lane.b32.xlu0 %v238, 94
    %v241 = vpop.permute.xlu0 %240
    %v242 = vrot.slane %v241, 2
    %v243 = vsel %vm159, %v241, %v242
    %v245 = vadd.f32 %v235, %v243
    %s246 = scalar_lea.vmem [#allocation2], 6
    %v247 = vld [vmem:[%s246] sm:$0x3f]
    %s248 = sld [smem:[#allocation7 + $0x100]]
    %v249 = vstv %s248
    %v250 = vmul.f32 %v249, %v247
    %s251 = sld [smem:[#allocation7 + $0x101]]
    %v252 = vstv %s251
    %v253 = vmul.f32 %v252, %v247
    %255 = vrot.lane.b32.xlu0 %v253, 127
    %v256 = vpop.permute.xlu0 %255
    %v257 = vrot.slane %v256, 2
    %v258 = vsel %vm82, %v256, %v257
    %v260 = vadd.f32 %v250, %v258
    %s261 = sld [smem:[#allocation7 + $0x102]]
    %v262 = vstv %s261
    %v263 = vmul.f32 %v262, %v247
    %265 = vrot.lane.b32.xlu0 %v263, 126
    %v266 = vpop.permute.xlu0 %265
    %v267 = vrot.slane %v266, 2
    %v268 = vsel %vm93, %v266, %v267
    %v270 = vadd.f32 %v260, %v268
    %s271 = sld [smem:[#allocation7 + $0x103]]
    %v272 = vstv %s271
    %v273 = vmul.f32 %v272, %v247
    %275 = vrot.lane.b32.xlu0 %v273, 112
    %v276 = vpop.permute.xlu0 %275
    %v277 = vrot.slane %v276, 2
    %v278 = vsel %vm104, %v276, %v277
    %v280 = vadd.f32 %v270, %v278
    %s281 = sld [smem:[#allocation7 + $0x104]]
    %v282 = vstv %s281
    %v283 = vmul.f32 %v282, %v247
    %285 = vrot.lane.b32.xlu0 %v283, 111
    %v286 = vpop.permute.xlu0 %285
    %v287 = vrot.slane %v286, 2
    %v288 = vsel %vm115, %v286, %v287
    %v290 = vadd.f32 %v280, %v288
    %s291 = sld [smem:[#allocation7 + $0x105]]
    %v292 = vstv %s291
    %v293 = vmul.f32 %v292, %v247
    %295 = vrot.lane.b32.xlu0 %v293, 110
    %v296 = vpop.permute.xlu0 %295
    %v297 = vrot.slane %v296, 2
    %v298 = vsel %vm126, %v296, %v297
    %v300 = vadd.f32 %v290, %v298
    %s301 = sld [smem:[#allocation7 + $0x106]]
    %v302 = vstv %s301
    %v303 = vmul.f32 %v302, %v247
    %305 = vrot.lane.b32.xlu0 %v303, 96
    %v306 = vpop.permute.xlu0 %305
    %v307 = vrot.slane %v306, 2
    %v308 = vsel %vm137, %v306, %v307
    %v310 = vadd.f32 %v300, %v308
    %s311 = sld [smem:[#allocation7 + $0x107]]
    %v312 = vstv %s311
    %v313 = vmul.f32 %v312, %v247
    %315 = vrot.lane.b32.xlu0 %v313, 95
    %v316 = vpop.permute.xlu0 %315
    %v317 = vrot.slane %v316, 2
    %v318 = vsel %vm148, %v316, %v317
    %v320 = vadd.f32 %v310, %v318
    %s321 = sld [smem:[#allocation7 + $0x108]]
    %v322 = vstv %s321
    %v323 = vmul.f32 %v322, %v247
    %325 = vrot.lane.b32.xlu0 %v323, 94
    %v326 = vpop.permute.xlu0 %325
    %v327 = vrot.slane %v326, 2
    %v328 = vsel %vm159, %v326, %v327
    %v330 = vadd.f32 %v320, %v328
    %s331 = sld [smem:[#allocation7 + $0x180]]
    %v332 = vstv %s331
    %v333 = vmul.f32 %v332, %v247
    %s334 = sld [smem:[#allocation7 + $0x181]]
    %v335 = vstv %s334
    %v336 = vmul.f32 %v335, %v247
    %338 = vrot.lane.b32.xlu0 %v336, 127
    %v339 = vpop.permute.xlu0 %338
    %v340 = vrot.slane %v339, 2
    %v341 = vsel %vm82, %v339, %v340
    %v343 = vadd.f32 %v333, %v341
    %s344 = sld [smem:[#allocation7 + $0x182]]
    %v345 = vstv %s344
    %v346 = vmul.f32 %v345, %v247
    %348 = vrot.lane.b32.xlu0 %v346, 126
    %v349 = vpop.permute.xlu0 %348
    %v350 = vrot.slane %v349, 2
    %v351 = vsel %vm93, %v349, %v350
    %v353 = vadd.f32 %v343, %v351
    %s354 = sld [smem:[#allocation7 + $0x183]]
    %v355 = vstv %s354
    %v356 = vmul.f32 %v355, %v247
    %358 = vrot.lane.b32.xlu0 %v356, 112
    %v359 = vpop.permute.xlu0 %358
    %v360 = vrot.slane %v359, 2
    %v361 = vsel %vm104, %v359, %v360
    %v363 = vadd.f32 %v353, %v361
    %s364 = sld [smem:[#allocation7 + $0x184]]
    %v365 = vstv %s364
    %v366 = vmul.f32 %v365, %v247
    %368 = vrot.lane.b32.xlu0 %v366, 111
    %v369 = vpop.permute.xlu0 %368
    %v370 = vrot.slane %v369, 2
    %v371 = vsel %vm115, %v369, %v370
    %v373 = vadd.f32 %v363, %v371
    %s374 = sld [smem:[#allocation7 + $0x185]]
    %v375 = vstv %s374
    %v376 = vmul.f32 %v375, %v247
    %378 = vrot.lane.b32.xlu0 %v376, 110
    %v379 = vpop.permute.xlu0 %378
    %v380 = vrot.slane %v379, 2
    %v381 = vsel %vm126, %v379, %v380
    %v383 = vadd.f32 %v373, %v381
    %s384 = sld [smem:[#allocation7 + $0x186]]
    %v385 = vstv %s384
    %v386 = vmul.f32 %v385, %v247
    %388 = vrot.lane.b32.xlu0 %v386, 96
    %v389 = vpop.permute.xlu0 %388
    %v390 = vrot.slane %v389, 2
    %v391 = vsel %vm137, %v389, %v390
    %v393 = vadd.f32 %v383, %v391
    %s394 = sld [smem:[#allocation7 + $0x187]]
    %v395 = vstv %s394
    %v396 = vmul.f32 %v395, %v247
    %398 = vrot.lane.b32.xlu0 %v396, 95
    %v399 = vpop.permute.xlu0 %398
    %v400 = vrot.slane %v399, 2
    %v401 = vsel %vm148, %v399, %v400
    %v403 = vadd.f32 %v393, %v401
    %s404 = sld [smem:[#allocation7 + $0x188]]
    %v405 = vstv %s404
    %v406 = vmul.f32 %v405, %v247
    %408 = vrot.lane.b32.xlu0 %v406, 94
    %v409 = vpop.permute.xlu0 %408
    %v410 = vrot.slane %v409, 2
    %v411 = vsel %vm159, %v409, %v410
    %v413 = vadd.f32 %v403, %v411
    %s414 = scalar_lea.vmem [#allocation2], 12
    %v415 = vld [vmem:[%s414] sm:$0x3f]
    %s416 = sld [smem:[#allocation7 + $0x200]]
    %v417 = vstv %s416
    %v418 = vmul.f32 %v417, %v415
    %s419 = sld [smem:[#allocation7 + $0x201]]
    %v420 = vstv %s419
    %v421 = vmul.f32 %v420, %v415
    %423 = vrot.lane.b32.xlu0 %v421, 127
    %v424 = vpop.permute.xlu0 %423
    %v425 = vrot.slane %v424, 2
    %v426 = vsel %vm82, %v424, %v425
    %v428 = vadd.f32 %v418, %v426
    %s429 = sld [smem:[#allocation7 + $0x202]]
    %v430 = vstv %s429
    %v431 = vmul.f32 %v430, %v415
    %433 = vrot.lane.b32.xlu0 %v431, 126
    %v434 = vpop.permute.xlu0 %433
    %v435 = vrot.slane %v434, 2
    %v436 = vsel %vm93, %v434, %v435
    %v438 = vadd.f32 %v428, %v436
    %s439 = sld [smem:[#allocation7 + $0x203]]
    %v440 = vstv %s439
    %v441 = vmul.f32 %v440, %v415
    %443 = vrot.lane.b32.xlu0 %v441, 112
    %v444 = vpop.permute.xlu0 %443
    %v445 = vrot.slane %v444, 2
    %v446 = vsel %vm104, %v444, %v445
    %v448 = vadd.f32 %v438, %v446
    %s449 = sld [smem:[#allocation7 + $0x204]]
    %v450 = vstv %s449
    %v451 = vmul.f32 %v450, %v415
    %453 = vrot.lane.b32.xlu0 %v451, 111
    %v454 = vpop.permute.xlu0 %453
    %v455 = vrot.slane %v454, 2
    %v456 = vsel %vm115, %v454, %v455
    %v458 = vadd.f32 %v448, %v456
    %s459 = sld [smem:[#allocation7 + $0x205]]
    %v460 = vstv %s459
    %v461 = vmul.f32 %v460, %v415
    %463 = vrot.lane.b32.xlu0 %v461, 110
    %v464 = vpop.permute.xlu0 %463
    %v465 = vrot.slane %v464, 2
    %v466 = vsel %vm126, %v464, %v465
    %v468 = vadd.f32 %v458, %v466
    %s469 = sld [smem:[#allocation7 + $0x206]]
    %v470 = vstv %s469
    %v471 = vmul.f32 %v470, %v415
    %473 = vrot.lane.b32.xlu0 %v471, 96
    %v474 = vpop.permute.xlu0 %473
    %v475 = vrot.slane %v474, 2
    %v476 = vsel %vm137, %v474, %v475
    %v478 = vadd.f32 %v468, %v476
    %s479 = sld [smem:[#allocation7 + $0x207]]
    %v480 = vstv %s479
    %v481 = vmul.f32 %v480, %v415
    %483 = vrot.lane.b32.xlu0 %v481, 95
    %v484 = vpop.permute.xlu0 %483
    %v485 = vrot.slane %v484, 2
    %v486 = vsel %vm148, %v484, %v485
    %v488 = vadd.f32 %v478, %v486
    %s489 = sld [smem:[#allocation7 + $0x208]]
    %v490 = vstv %s489
    %v491 = vmul.f32 %v490, %v415
    %493 = vrot.lane.b32.xlu0 %v491, 94
    %v494 = vpop.permute.xlu0 %493
    %v495 = vrot.slane %v494, 2
    %v496 = vsel %vm159, %v494, %v495
    %v498 = vadd.f32 %v488, %v496
    %s499 = sld [smem:[#allocation7 + $0x280]]
    %v500 = vstv %s499
    %v501 = vmul.f32 %v500, %v415
    %s502 = sld [smem:[#allocation7 + $0x281]]
    %v503 = vstv %s502
    %v504 = vmul.f32 %v503, %v415
    %506 = vrot.lane.b32.xlu0 %v504, 127
    %v507 = vpop.permute.xlu0 %506
    %v508 = vrot.slane %v507, 2
    %v509 = vsel %vm82, %v507, %v508
    %v511 = vadd.f32 %v501, %v509
    %s512 = sld [smem:[#allocation7 + $0x282]]
    %v513 = vstv %s512
    %v514 = vmul.f32 %v513, %v415
    %516 = vrot.lane.b32.xlu0 %v514, 126
    %v517 = vpop.permute.xlu0 %516
    %v518 = vrot.slane %v517, 2
    %v519 = vsel %vm93, %v517, %v518
    %v521 = vadd.f32 %v511, %v519
    %s522 = sld [smem:[#allocation7 + $0x283]]
    %v523 = vstv %s522
    %v524 = vmul.f32 %v523, %v415
    %526 = vrot.lane.b32.xlu0 %v524, 112
    %v527 = vpop.permute.xlu0 %526
    %v528 = vrot.slane %v527, 2
    %v529 = vsel %vm104, %v527, %v528
    %v531 = vadd.f32 %v521, %v529
    %s532 = sld [smem:[#allocation7 + $0x284]]
    %v533 = vstv %s532
    %v534 = vmul.f32 %v533, %v415
    %536 = vrot.lane.b32.xlu0 %v534, 111
    %v537 = vpop.permute.xlu0 %536
    %v538 = vrot.slane %v537, 2
    %v539 = vsel %vm115, %v537, %v538
    %v541 = vadd.f32 %v531, %v539
    %s542 = sld [smem:[#allocation7 + $0x285]]
    %v543 = vstv %s542
    %v544 = vmul.f32 %v543, %v415
    %546 = vrot.lane.b32.xlu0 %v544, 110
    %v547 = vpop.permute.xlu0 %546
    %v548 = vrot.slane %v547, 2
    %v549 = vsel %vm126, %v547, %v548
    %v551 = vadd.f32 %v541, %v549
    %s552 = sld [smem:[#allocation7 + $0x286]]
    %v553 = vstv %s552
    %v554 = vmul.f32 %v553, %v415
    %556 = vrot.lane.b32.xlu0 %v554, 96
    %v557 = vpop.permute.xlu0 %556
    %v558 = vrot.slane %v557, 2
    %v559 = vsel %vm137, %v557, %v558
    %v561 = vadd.f32 %v551, %v559
    %s562 = sld [smem:[#allocation7 + $0x287]]
    %v563 = vstv %s562
    %v564 = vmul.f32 %v563, %v415
    %566 = vrot.lane.b32.xlu0 %v564, 95
    %v567 = vpop.permute.xlu0 %566
    %v568 = vrot.slane %v567, 2
    %v569 = vsel %vm148, %v567, %v568
    %v571 = vadd.f32 %v561, %v569
    %s572 = sld [smem:[#allocation7 + $0x288]]
    %v573 = vstv %s572
    %v574 = vmul.f32 %v573, %v415
    %576 = vrot.lane.b32.xlu0 %v574, 94
    %v577 = vpop.permute.xlu0 %576
    %v578 = vrot.slane %v577, 2
    %v579 = vsel %vm159, %v577, %v578
    %v581 = vadd.f32 %v571, %v579
    %s582 = scalar_lea.vmem [#allocation2], 18
    %v583 = vld [vmem:[%s582] sm:$0x3f]
    %s584 = sld [smem:[#allocation7 + $0x300]]
    %v585 = vstv %s584
    %v586 = vmul.f32 %v585, %v583
    %s587 = sld [smem:[#allocation7 + $0x301]]
    %v588 = vstv %s587
    %v589 = vmul.f32 %v588, %v583
    %591 = vrot.lane.b32.xlu0 %v589, 127
    %v592 = vpop.permute.xlu0 %591
    %v593 = vrot.slane %v592, 2
    %v594 = vsel %vm82, %v592, %v593
    %v596 = vadd.f32 %v586, %v594
    %s597 = sld [smem:[#allocation7 + $0x302]]
    %v598 = vstv %s597
    %v599 = vmul.f32 %v598, %v583
    %601 = vrot.lane.b32.xlu0 %v599, 126
    %v602 = vpop.permute.xlu0 %601
    %v603 = vrot.slane %v602, 2
    %v604 = vsel %vm93, %v602, %v603
    %v606 = vadd.f32 %v596, %v604
    %s607 = sld [smem:[#allocation7 + $0x303]]
    %v608 = vstv %s607
    %v609 = vmul.f32 %v608, %v583
    %611 = vrot.lane.b32.xlu0 %v609, 112
    %v612 = vpop.permute.xlu0 %611
    %v613 = vrot.slane %v612, 2
    %v614 = vsel %vm104, %v612, %v613
    %v616 = vadd.f32 %v606, %v614
    %s617 = sld [smem:[#allocation7 + $0x304]]
    %v618 = vstv %s617
    %v619 = vmul.f32 %v618, %v583
    %621 = vrot.lane.b32.xlu0 %v619, 111
    %v622 = vpop.permute.xlu0 %621
    %v623 = vrot.slane %v622, 2
    %v624 = vsel %vm115, %v622, %v623
    %v626 = vadd.f32 %v616, %v624
    %s627 = sld [smem:[#allocation7 + $0x305]]
    %v628 = vstv %s627
    %v629 = vmul.f32 %v628, %v583
    %631 = vrot.lane.b32.xlu0 %v629, 110
    %v632 = vpop.permute.xlu0 %631
    %v633 = vrot.slane %v632, 2
    %v634 = vsel %vm126, %v632, %v633
    %v636 = vadd.f32 %v626, %v634
    %s637 = sld [smem:[#allocation7 + $0x306]]
    %v638 = vstv %s637
    %v639 = vmul.f32 %v638, %v583
    %641 = vrot.lane.b32.xlu0 %v639, 96
    %v642 = vpop.permute.xlu0 %641
    %v643 = vrot.slane %v642, 2
    %v644 = vsel %vm137, %v642, %v643
    %v646 = vadd.f32 %v636, %v644
    %s647 = sld [smem:[#allocation7 + $0x307]]
    %v648 = vstv %s647
    %v649 = vmul.f32 %v648, %v583
    %651 = vrot.lane.b32.xlu0 %v649, 95
    %v652 = vpop.permute.xlu0 %651
    %v653 = vrot.slane %v652, 2
    %v654 = vsel %vm148, %v652, %v653
    %v656 = vadd.f32 %v646, %v654
    %s657 = sld [smem:[#allocation7 + $0x308]]
    %v658 = vstv %s657
    %v659 = vmul.f32 %v658, %v583
    %661 = vrot.lane.b32.xlu0 %v659, 94
    %v662 = vpop.permute.xlu0 %661
    %v663 = vrot.slane %v662, 2
    %v664 = vsel %vm159, %v662, %v663
    %v666 = vadd.f32 %v656, %v664
    %s667 = sld [smem:[#allocation7 + $0x380]]
    %v668 = vstv %s667
    %v669 = vmul.f32 %v668, %v583
    %s670 = sld [smem:[#allocation7 + $0x381]]
    %v671 = vstv %s670
    %v672 = vmul.f32 %v671, %v583
    %674 = vrot.lane.b32.xlu0 %v672, 127
    %v675 = vpop.permute.xlu0 %674
    %v676 = vrot.slane %v675, 2
    %v677 = vsel %vm82, %v675, %v676
    %v679 = vadd.f32 %v669, %v677
    %s680 = sld [smem:[#allocation7 + $0x382]]
    %v681 = vstv %s680
    %v682 = vmul.f32 %v681, %v583
    %684 = vrot.lane.b32.xlu0 %v682, 126
    %v685 = vpop.permute.xlu0 %684
    %v686 = vrot.slane %v685, 2
    %v687 = vsel %vm93, %v685, %v686
    %v689 = vadd.f32 %v679, %v687
    %s690 = sld [smem:[#allocation7 + $0x383]]
    %v691 = vstv %s690
    %v692 = vmul.f32 %v691, %v583
    %694 = vrot.lane.b32.xlu0 %v692, 112
    %v695 = vpop.permute.xlu0 %694
    %v696 = vrot.slane %v695, 2
    %v697 = vsel %vm104, %v695, %v696
    %v699 = vadd.f32 %v689, %v697
    %s700 = sld [smem:[#allocation7 + $0x384]]
    %v701 = vstv %s700
    %v702 = vmul.f32 %v701, %v583
    %704 = vrot.lane.b32.xlu0 %v702, 111
    %v705 = vpop.permute.xlu0 %704
    %v706 = vrot.slane %v705, 2
    %v707 = vsel %vm115, %v705, %v706
    %v709 = vadd.f32 %v699, %v707
    %s710 = sld [smem:[#allocation7 + $0x385]]
    %v711 = vstv %s710
    %v712 = vmul.f32 %v711, %v583
    %714 = vrot.lane.b32.xlu0 %v712, 110
    %v715 = vpop.permute.xlu0 %714
    %v716 = vrot.slane %v715, 2
    %v717 = vsel %vm126, %v715, %v716
    %v719 = vadd.f32 %v709, %v717
    %s720 = sld [smem:[#allocation7 + $0x386]]
    %v721 = vstv %s720
    %v722 = vmul.f32 %v721, %v583
    %724 = vrot.lane.b32.xlu0 %v722, 96
    %v725 = vpop.permute.xlu0 %724
    %v726 = vrot.slane %v725, 2
    %v727 = vsel %vm137, %v725, %v726
    %v729 = vadd.f32 %v719, %v727
    %s730 = sld [smem:[#allocation7 + $0x387]]
    %v731 = vstv %s730
    %v732 = vmul.f32 %v731, %v583
    %734 = vrot.lane.b32.xlu0 %v732, 95
    %v735 = vpop.permute.xlu0 %734
    %v736 = vrot.slane %v735, 2
    %v737 = vsel %vm148, %v735, %v736
    %v739 = vadd.f32 %v729, %v737
    %s740 = sld [smem:[#allocation7 + $0x388]]
    %v741 = vstv %s740
    %v742 = vmul.f32 %v741, %v583
    %744 = vrot.lane.b32.xlu0 %v742, 94
    %v745 = vpop.permute.xlu0 %744
    %v746 = vrot.slane %v745, 2
    %v747 = vsel %vm159, %v745, %v746
    %v749 = vadd.f32 %v739, %v747
    %s750 = sld [smem:[#allocation8]]
    %v751 = vstv %s750
    %v752 = vmul.f32 %v751, %v162
    %s753 = sld [smem:[#allocation8 + $0x1]]
    %v754 = vstv %s753
    %v755 = vmul.f32 %v754, %v245
    %v756 = vadd.f32 %v752, %v755
    %s757 = sld [smem:[#allocation8 + $0x2]]
    %v758 = vstv %s757
    %v759 = vmul.f32 %v758, %v330
    %v760 = vadd.f32 %v756, %v759
    %s761 = sld [smem:[#allocation8 + $0x3]]
    %v762 = vstv %s761
    %v763 = vmul.f32 %v762, %v413
    %v764 = vadd.f32 %v760, %v763
    %s765 = sld [smem:[#allocation8 + $0x4]]
    %v766 = vstv %s765
    %v767 = vmul.f32 %v766, %v498
    %v768 = vadd.f32 %v764, %v767
    %s769 = sld [smem:[#allocation8 + $0x5]]
    %v770 = vstv %s769
    %v771 = vmul.f32 %v770, %v581
    %v772 = vadd.f32 %v768, %v771
    %s773 = sld [smem:[#allocation8 + $0x6]]
    %v774 = vstv %s773
    %v775 = vmul.f32 %v774, %v666
    %v776 = vadd.f32 %v772, %v775
    %s777 = sld [smem:[#allocation8 + $0x7]]
    %v778 = vstv %s777
    %v779 = vmul.f32 %v778, %v749
    %v780 = vadd.f32 %v776, %v779
    %s781 = sld [smem:[#allocation10]]
    %v782 = vstv %s781
    %v783 = vadd.f32 %v780, %v782
    %784 = vst [vmem:[#allocation11] sm:$0xf] %v783
    %s785 = sld [smem:[#allocation8 + $0x80]]
    %v786 = vstv %s785
    %v787 = vmul.f32 %v786, %v162
    %s788 = sld [smem:[#allocation8 + $0x81]]
    %v789 = vstv %s788
    %v790 = vmul.f32 %v789, %v245
    %v791 = vadd.f32 %v787, %v790
    %s792 = sld [smem:[#allocation8 + $0x82]]
    %v793 = vstv %s792
    %v794 = vmul.f32 %v793, %v330
    %v795 = vadd.f32 %v791, %v794
    %s796 = sld [smem:[#allocation8 + $0x83]]
    %v797 = vstv %s796
    %v798 = vmul.f32 %v797, %v413
    %v799 = vadd.f32 %v795, %v798
    %s800 = sld [smem:[#allocation8 + $0x84]]
    %v801 = vstv %s800
    %v802 = vmul.f32 %v801, %v498
    %v803 = vadd.f32 %v799, %v802
    %s804 = sld [smem:[#allocation8 + $0x85]]
    %v805 = vstv %s804
    %v806 = vmul.f32 %v805, %v581
    %v807 = vadd.f32 %v803, %v806
    %s808 = sld [smem:[#allocation8 + $0x86]]
    %v809 = vstv %s808
    %v810 = vmul.f32 %v809, %v666
    %v811 = vadd.f32 %v807, %v810
    %s812 = sld [smem:[#allocation8 + $0x87]]
    %v813 = vstv %s812
    %v814 = vmul.f32 %v813, %v749
    %v815 = vadd.f32 %v811, %v814
    %s816 = sld [smem:[#allocation10 + $0x1]]
    %v817 = vstv %s816
    %v818 = vadd.f32 %v815, %v817
    %s819 = scalar_lea.vmem [#allocation11], 4
    %820 = vst [vmem:[%s819] sm:$0xf] %v818
    %s821 = sld [smem:[#allocation8 + $0x100]]
    %v822 = vstv %s821
    %v823 = vmul.f32 %v822, %v162
    %s824 = sld [smem:[#allocation8 + $0x101]]
    %v825 = vstv %s824
    %v826 = vmul.f32 %v825, %v245
    %v827 = vadd.f32 %v823, %v826
    %s828 = sld [smem:[#allocation8 + $0x102]]
    %v829 = vstv %s828
    %v830 = vmul.f32 %v829, %v330
    %v831 = vadd.f32 %v827, %v830
    %s832 = sld [smem:[#allocation8 + $0x103]]
    %v833 = vstv %s832
    %v834 = vmul.f32 %v833, %v413
    %v835 = vadd.f32 %v831, %v834
    %s836 = sld [smem:[#allocation8 + $0x104]]
    %v837 = vstv %s836
    %v838 = vmul.f32 %v837, %v498
    %v839 = vadd.f32 %v835, %v838
    %s840 = sld [smem:[#allocation8 + $0x105]]
    %v841 = vstv %s840
    %v842 = vmul.f32 %v841, %v581
    %v843 = vadd.f32 %v839, %v842
    %s844 = sld [smem:[#allocation8 + $0x106]]
    %v845 = vstv %s844
    %v846 = vmul.f32 %v845, %v666
    %v847 = vadd.f32 %v843, %v846
    %s848 = sld [smem:[#allocation8 + $0x107]]
    %v849 = vstv %s848
    %v850 = vmul.f32 %v849, %v749
    %v851 = vadd.f32 %v847, %v850
    %s852 = sld [smem:[#allocation10 + $0x2]]
    %v853 = vstv %s852
    %v854 = vadd.f32 %v851, %v853
    %s855 = scalar_lea.vmem [#allocation11], 8
    %856 = vst [vmem:[%s855] sm:$0xf] %v854
    %s857 = sld [smem:[#allocation8 + $0x180]]
    %v858 = vstv %s857
    %v859 = vmul.f32 %v858, %v162
    %s860 = sld [smem:[#allocation8 + $0x181]]
    %v861 = vstv %s860
    %v862 = vmul.f32 %v861, %v245
    %v863 = vadd.f32 %v859, %v862
    %s864 = sld [smem:[#allocation8 + $0x182]]
    %v865 = vstv %s864
    %v866 = vmul.f32 %v865, %v330
    %v867 = vadd.f32 %v863, %v866
    %s868 = sld [smem:[#allocation8 + $0x183]]
    %v869 = vstv %s868
    %v870 = vmul.f32 %v869, %v413
    %v871 = vadd.f32 %v867, %v870
    %s872 = sld [smem:[#allocation8 + $0x184]]
    %v873 = vstv %s872
    %v874 = vmul.f32 %v873, %v498
    %v875 = vadd.f32 %v871, %v874
    %s876 = sld [smem:[#allocation8 + $0x185]]
    %v877 = vstv %s876
    %v878 = vmul.f32 %v877, %v581
    %v879 = vadd.f32 %v875, %v878
    %s880 = sld [smem:[#allocation8 + $0x186]]
    %v881 = vstv %s880
    %v882 = vmul.f32 %v881, %v666
    %v883 = vadd.f32 %v879, %v882
    %s884 = sld [smem:[#allocation8 + $0x187]]
    %v885 = vstv %s884
    %v886 = vmul.f32 %v885, %v749
    %v887 = vadd.f32 %v883, %v886
    %s888 = sld [smem:[#allocation10 + $0x3]]
    %v889 = vstv %s888
    %v890 = vadd.f32 %v887, %v889
    %s891 = scalar_lea.vmem [#allocation11], 12
    %892 = vst [vmem:[%s891] sm:$0xf] %v890
    %s893 = sld [smem:[#allocation8 + $0x200]]
    %v894 = vstv %s893
    %v895 = vmul.f32 %v894, %v162
    %s896 = sld [smem:[#allocation8 + $0x201]]
    %v897 = vstv %s896
    %v898 = vmul.f32 %v897, %v245
    %v899 = vadd.f32 %v895, %v898
    %s900 = sld [smem:[#allocation8 + $0x202]]
    %v901 = vstv %s900
    %v902 = vmul.f32 %v901, %v330
    %v903 = vadd.f32 %v899, %v902
    %s904 = sld [smem:[#allocation8 + $0x203]]
    %v905 = vstv %s904
    %v906 = vmul.f32 %v905, %v413
    %v907 = vadd.f32 %v903, %v906
    %s908 = sld [smem:[#allocation8 + $0x204]]
    %v909 = vstv %s908
    %v910 = vmul.f32 %v909, %v498
    %v911 = vadd.f32 %v907, %v910
    %s912 = sld [smem:[#allocation8 + $0x205]]
    %v913 = vstv %s912
    %v914 = vmul.f32 %v913, %v581
    %v915 = vadd.f32 %v911, %v914
    %s916 = sld [smem:[#allocation8 + $0x206]]
    %v917 = vstv %s916
    %v918 = vmul.f32 %v917, %v666
    %v919 = vadd.f32 %v915, %v918
    %s920 = sld [smem:[#allocation8 + $0x207]]
    %v921 = vstv %s920
    %v922 = vmul.f32 %v921, %v749
    %v923 = vadd.f32 %v919, %v922
    %s924 = sld [smem:[#allocation10 + $0x4]]
    %v925 = vstv %s924
    %v926 = vadd.f32 %v923, %v925
    %s927 = scalar_lea.vmem [#allocation11], 16
    %928 = vst [vmem:[%s927] sm:$0xf] %v926
    %s929 = sld [smem:[#allocation8 + $0x280]]
    %v930 = vstv %s929
    %v931 = vmul.f32 %v930, %v162
    %s932 = sld [smem:[#allocation8 + $0x281]]
    %v933 = vstv %s932
    %v934 = vmul.f32 %v933, %v245
    %v935 = vadd.f32 %v931, %v934
    %s936 = sld [smem:[#allocation8 + $0x282]]
    %v937 = vstv %s936
    %v938 = vmul.f32 %v937, %v330
    %v939 = vadd.f32 %v935, %v938
    %s940 = sld [smem:[#allocation8 + $0x283]]
    %v941 = vstv %s940
    %v942 = vmul.f32 %v941, %v413
    %v943 = vadd.f32 %v939, %v942
    %s944 = sld [smem:[#allocation8 + $0x284]]
    %v945 = vstv %s944
    %v946 = vmul.f32 %v945, %v498
    %v947 = vadd.f32 %v943, %v946
    %s948 = sld [smem:[#allocation8 + $0x285]]
    %v949 = vstv %s948
    %v950 = vmul.f32 %v949, %v581
    %v951 = vadd.f32 %v947, %v950
    %s952 = sld [smem:[#allocation8 + $0x286]]
    %v953 = vstv %s952
    %v954 = vmul.f32 %v953, %v666
    %v955 = vadd.f32 %v951, %v954
    %s956 = sld [smem:[#allocation8 + $0x287]]
    %v957 = vstv %s956
    %v958 = vmul.f32 %v957, %v749
    %v959 = vadd.f32 %v955, %v958
    %s960 = sld [smem:[#allocation10 + $0x5]]
    %v961 = vstv %s960
    %v962 = vadd.f32 %v959, %v961
    %s963 = scalar_lea.vmem [#allocation11], 20
    %964 = vst [vmem:[%s963] sm:$0xf] %v962
    %s965 = sld [smem:[#allocation8 + $0x300]]
    %v966 = vstv %s965
    %v967 = vmul.f32 %v966, %v162
    %s968 = sld [smem:[#allocation8 + $0x301]]
    %v969 = vstv %s968
    %v970 = vmul.f32 %v969, %v245
    %v971 = vadd.f32 %v967, %v970
    %s972 = sld [smem:[#allocation8 + $0x302]]
    %v973 = vstv %s972
    %v974 = vmul.f32 %v973, %v330
    %v975 = vadd.f32 %v971, %v974
    %s976 = sld [smem:[#allocation8 + $0x303]]
    %v977 = vstv %s976
    %v978 = vmul.f32 %v977, %v413
    %v979 = vadd.f32 %v975, %v978
    %s980 = sld [smem:[#allocation8 + $0x304]]
    %v981 = vstv %s980
    %v982 = vmul.f32 %v981, %v498
    %v983 = vadd.f32 %v979, %v982
    %s984 = sld [smem:[#allocation8 + $0x305]]
    %v985 = vstv %s984
    %v986 = vmul.f32 %v985, %v581
    %v987 = vadd.f32 %v983, %v986
    %s988 = sld [smem:[#allocation8 + $0x306]]
    %v989 = vstv %s988
    %v990 = vmul.f32 %v989, %v666
    %v991 = vadd.f32 %v987, %v990
    %s992 = sld [smem:[#allocation8 + $0x307]]
    %v993 = vstv %s992
    %v994 = vmul.f32 %v993, %v749
    %v995 = vadd.f32 %v991, %v994
    %s996 = sld [smem:[#allocation10 + $0x6]]
    %v997 = vstv %s996
    %v998 = vadd.f32 %v995, %v997
    %s999 = scalar_lea.vmem [#allocation11], 24
    %1000 = vst [vmem:[%s999] sm:$0xf] %v998
    %s1001 = sld [smem:[#allocation8 + $0x380]]
    %v1002 = vstv %s1001
    %v1003 = vmul.f32 %v1002, %v162
    %s1004 = sld [smem:[#allocation8 + $0x381]]
    %v1005 = vstv %s1004
    %v1006 = vmul.f32 %v1005, %v245
    %v1007 = vadd.f32 %v1003, %v1006
    %s1008 = sld [smem:[#allocation8 + $0x382]]
    %v1009 = vstv %s1008
    %v1010 = vmul.f32 %v1009, %v330
    %v1011 = vadd.f32 %v1007, %v1010
    %s1012 = sld [smem:[#allocation8 + $0x383]]
    %v1013 = vstv %s1012
    %v1014 = vmul.f32 %v1013, %v413
    %v1015 = vadd.f32 %v1011, %v1014
    %s1016 = sld [smem:[#allocation8 + $0x384]]
    %v1017 = vstv %s1016
    %v1018 = vmul.f32 %v1017, %v498
    %v1019 = vadd.f32 %v1015, %v1018
    %s1020 = sld [smem:[#allocation8 + $0x385]]
    %v1021 = vstv %s1020
    %v1022 = vmul.f32 %v1021, %v581
    %v1023 = vadd.f32 %v1019, %v1022
    %s1024 = sld [smem:[#allocation8 + $0x386]]
    %v1025 = vstv %s1024
    %v1026 = vmul.f32 %v1025, %v666
    %v1027 = vadd.f32 %v1023, %v1026
    %s1028 = sld [smem:[#allocation8 + $0x387]]
    %v1029 = vstv %s1028
    %v1030 = vmul.f32 %v1029, %v749
    %v1031 = vadd.f32 %v1027, %v1030
    %s1032 = sld [smem:[#allocation10 + $0x7]]
    %v1033 = vstv %s1032
    %v1034 = vadd.f32 %v1031, %v1033
    %s1035 = scalar_lea.vmem [#allocation11], 28
    %1036 = vst [vmem:[%s1035] sm:$0xf] %v1034
    // Predicated region
    $region34: #{tpu_custom_call.1} parent=1 // pred_check
      _
    $region35: #{tpu_custom_call.1} parent=1 // pred_check_branch
      %1038 = sbr.rel (0) target = $region37
    $region36: #{tpu_custom_call.1} parent=1 // pred_region
      %1040 = vsyncadd [#allocation4], 0
      %s1041 = sshll.u32 [#allocation11], 4
      %s1042 = int_to_ptr.vmem [resolvable:$true] %s1041
      %s1043 = sshll.u32 %s4, 4
      %s1044 = int_to_ptr.hbm [resolvable:$true] %s1043
      %1049 = dma.vmem_to_hbm [thread:$0]  %s1042, 512, %s1044, [#allocation4], 64, 64, 4
    $region37: #{tpu_custom_call.1} parent=1 // pred_fallthru
      _
    // Predicated region
    $region38: #{tpu_custom_call.1} parent=1 // pred_check
      _
    $region39: #{tpu_custom_call.1} parent=1 // pred_check_branch
      %1051 = sbr.rel (0) target = $region41
    $region40: #{tpu_custom_call.1} parent=1 // pred_region
      %1053 = dma.done [#allocation4], 512
    $region41: #{tpu_custom_call.1} parent=1 // pred_fallthru
      _
    %1054 = vsyncpa [#allocation3], 1
    %1055 = vsyncpa [#allocation4], 1
    %1056 = vsyncpa [#allocation5], 1
    %1057 = vsyncpa [#allocation9], 1
    %1058 = vsyncpa [#allocation6], 1

</llo_original>
